<compile_context>
chip_gen: v7x
topology: tpu7x:2x2x1
jax: 0.10.0
libtpu: 0.0.40
codegen_flags: <defaults>
</compile_context>

<pallas_src>
import jax
import jax.numpy as jnp
from jax.experimental import pallas as pl
from jax.experimental.pallas import tpu as pltpu

LAYERS = [4, 80, 80, 80, 80, 80, 80, 1]
N_LIN = len(LAYERS) - 1  # 7 linear layers
PAD = 128                # lane-aligned padded feature width


def mlp_kernel(x_ref, w_ref, b_ref, out_ref):
    """Fused MLP on a (tm, 128) activation tile.

    x_ref:   (tm, 128)      padded input activations
    w_ref:   (7, 128, 128)  stacked, zero-padded weights, (in, out) layout
    b_ref:   (7, 1, 128)    stacked, zero-padded biases
    out_ref: (tm, 128)      padded output (real result in column 0)
    """
    h = x_ref[...].astype(jnp.float32)
    # hidden layers: Linear + Tanh (static index i -> zero-cost ref views).
    for i in range(N_LIN - 1):
        h = jnp.tanh(
            jnp.dot(h, w_ref[i], preferred_element_type=jnp.float32) + b_ref[i]
        )
    # final Linear (no activation)
    out = (
        jnp.dot(h, w_ref[N_LIN - 1], preferred_element_type=jnp.float32)
        + b_ref[N_LIN - 1]
    )
    out_ref[...] = out.astype(out_ref.dtype)


def pad_and_stack_params(weights, biases):
    """Zero-pad every layer to (128, 128)/(1, 128) and stack into two arrays."""
    w_stack = jnp.zeros((N_LIN, PAD, PAD), jnp.float32)
    b_stack = jnp.zeros((N_LIN, 1, PAD), jnp.float32)
    for i, (w, b) in enumerate(zip(weights, biases)):
        w_stack = w_stack.at[i, : w.shape[0], : w.shape[1]].set(w)
        b_stack = b_stack.at[i, :, : b.shape[1]].set(b)
    return w_stack, b_stack


def dnn2_forward(x, w_stack, b_stack, *, tm=512):
    """Run the fused MLP kernel, tiling over the batch dimension only."""
    N, din = x.shape
    assert tm % 8 == 0, "batch tile must be a multiple of 8 (sublane alignment)"

    n_tiles = pl.cdiv(N, tm)
    n_pad = n_tiles * tm

    # Wrapper-side padding: batch to a multiple of tm, features to 128 lanes.
    x_pad = jnp.zeros((n_pad, PAD), x.dtype).at[:N, :din].set(x)

    in_specs = [
        pl.BlockSpec((tm, PAD), lambda i: (i, 0)),              # activations: batch-tiled
        pl.BlockSpec((N_LIN, PAD, PAD), lambda i: (0, 0, 0)),   # weights: resident
        pl.BlockSpec((N_LIN, 1, PAD), lambda i: (0, 0, 0)),     # biases: resident
    ]
    out_spec = pl.BlockSpec((tm, PAD), lambda i: (i, 0))        # lane-dense output block

    weight_bytes = w_stack.size * 4 + b_stack.size * 4
    cost = pl.CostEstimate(
        flops=2 * n_pad * PAD * PAD * N_LIN,
        transcendentals=(N_LIN - 1) * n_pad * PAD,
        bytes_accessed=2 * n_pad * PAD * 4 + weight_bytes,
    )

    out_pad = pl.pallas_call(
        mlp_kernel,
        out_shape=jax.ShapeDtypeStruct((n_pad, PAD), x.dtype),
        grid_spec=pltpu.PrefetchScalarGridSpec(
            num_scalar_prefetch=0,
            grid=(n_tiles,),
            in_specs=in_specs,
            out_specs=out_spec,
        ),
        compiler_params=pltpu.CompilerParams(
            dimension_semantics=("parallel",),
        ),
        cost_estimate=cost,
    )(x_pad, w_stack, b_stack)

    # Slice back to the true batch and the single real output column.
    return out_pad[:N, : LAYERS[-1]]


def init_params(key):
    """Deterministic init mimicking torch.nn.Linear default (U[-1/sqrt(fan_in), ...])."""
    weights, biases = [], []
    for i in range(N_LIN):
        fan_in, fan_out = LAYERS[i], LAYERS[i + 1]
        key, kw, kb = jax.random.split(key, 3)
        bound = 1.0 / jnp.sqrt(jnp.float32(fan_in))
        w = jax.random.uniform(kw, (fan_in, fan_out), jnp.float32, -bound, bound)
        b = jax.random.uniform(kb, (1, fan_out), jnp.float32, -bound, bound)
        weights.append(w)
        biases.append(b)
    return weights, biases


def reference_forward(x, weights, biases):
    h = x
    for i in range(N_LIN - 1):
        h = jnp.tanh(h @ weights[i] + biases[i])
    return h @ weights[-1] + biases[-1]


if __name__ == "__main__":
    key = jax.random.PRNGKey(0)
    key, kx = jax.random.split(key)

    # Small demo: a non-multiple batch exercises the cdiv + padding path,
    # tm=256 gives a 2-tile parallel grid (so v7x can shard across both TCs).
    N = 300
    x = jax.random.uniform(kx, (N, LAYERS[0]), jnp.float32, -1.0, 1.0)

    weights, biases = init_params(key)
    w_stack, b_stack = pad_and_stack_params(weights, biases)

    out = dnn2_forward(x, w_stack, b_stack, tm=256)
    out = jax.block_until_ready(out)

    ref = reference_forward(x, weights, biases)
    assert out.shape == (N, 1)
    assert jnp.allclose(out, ref, atol=1e-5, rtol=1e-5)

    print("KERNEL_OK")
</pallas_src>

<mosaic_0001>
module attributes {stable_mosaic.version = 11 : i64} {
  func.func @mlp_kernel(%arg0: i32, %arg1: memref<256x128xf32, #tpu.memory_space<vmem>>, %arg2: memref<7x128x128xf32, #tpu.memory_space<vmem>>, %arg3: memref<7x1x128xf32, #tpu.memory_space<vmem>>, %arg4: memref<256x128xf32, #tpu.memory_space<vmem>>) attributes {dimension_semantics = [#tpu.dimension_semantics<parallel>], iteration_bounds = array<i64: 2>, scalar_prefetch = 0 : i64, scratch_operands = 0 : i64, tpu.core_type = #tpu.core_type<tc>, window_params = [{transform_indices = @transform_0, window_bounds = array<i64: 256, 128>}, {pipeline_mode = #tpu.pipeline_mode<synchronous>, transform_indices = @transform_1, window_bounds = array<i64: 7, 128, 128>}, {pipeline_mode = #tpu.pipeline_mode<synchronous>, transform_indices = @transform_2, window_bounds = array<i64: 7, 1, 128>}, {transform_indices = @transform_3, window_bounds = array<i64: 256, 128>}]} {
    %c0 = arith.constant 0 : index
    %c0_0 = arith.constant 0 : index
    %0 = vector.load %arg1[%c0, %c0_0] : memref<256x128xf32, #tpu.memory_space<vmem>>, vector<256x128xf32>
    %c0_1 = arith.constant 0 : index
    %c0_2 = arith.constant 0 : index
    %c0_3 = arith.constant 0 : index
    %1 = vector.load %arg2[%c0_1, %c0_2, %c0_3] : memref<7x128x128xf32, #tpu.memory_space<vmem>>, vector<1x128x128xf32>
    %2 = vector.shape_cast %1 : vector<1x128x128xf32> to vector<128x128xf32>
    %cst = arith.constant dense<0.000000e+00> : vector<256x128xf32>
    %3 = tpu.matmul %0, %2, %cst {dimension_numbers = #tpu.dot_dimension_numbers<[1], [0], [0], [1], [0, 0, 1, 1], [], []>} : vector<256x128xf32>, vector<128x128xf32>, vector<256x128xf32> -> vector<256x128xf32>
    %c0_4 = arith.constant 0 : index
    %c0_5 = arith.constant 0 : index
    %c0_6 = arith.constant 0 : index
    %4 = vector.load %arg3[%c0_4, %c0_5, %c0_6] : memref<7x1x128xf32, #tpu.memory_space<vmem>>, vector<1x1x128xf32>
    %5 = vector.shape_cast %4 : vector<1x1x128xf32> to vector<1x128xf32>
    %6 = vector.broadcast %5 : vector<1x128xf32> to vector<256x128xf32>
    %7 = arith.addf %3, %6 : vector<256x128xf32>
    %8 = math.tanh %7 : vector<256x128xf32>
    %c1 = arith.constant 1 : index
    %c0_7 = arith.constant 0 : index
    %c0_8 = arith.constant 0 : index
    %9 = vector.load %arg2[%c1, %c0_7, %c0_8] : memref<7x128x128xf32, #tpu.memory_space<vmem>>, vector<1x128x128xf32>
    %10 = vector.shape_cast %9 : vector<1x128x128xf32> to vector<128x128xf32>
    %cst_9 = arith.constant dense<0.000000e+00> : vector<256x128xf32>
    %11 = tpu.matmul %8, %10, %cst_9 {dimension_numbers = #tpu.dot_dimension_numbers<[1], [0], [0], [1], [0, 0, 1, 1], [], []>} : vector<256x128xf32>, vector<128x128xf32>, vector<256x128xf32> -> vector<256x128xf32>
    %c1_10 = arith.constant 1 : index
    %c0_11 = arith.constant 0 : index
    %c0_12 = arith.constant 0 : index
    %12 = vector.load %arg3[%c1_10, %c0_11, %c0_12] : memref<7x1x128xf32, #tpu.memory_space<vmem>>, vector<1x1x128xf32>
    %13 = vector.shape_cast %12 : vector<1x1x128xf32> to vector<1x128xf32>
    %14 = vector.broadcast %13 : vector<1x128xf32> to vector<256x128xf32>
    %15 = arith.addf %11, %14 : vector<256x128xf32>
    %16 = math.tanh %15 : vector<256x128xf32>
    %c2 = arith.constant 2 : index
    %c0_13 = arith.constant 0 : index
    %c0_14 = arith.constant 0 : index
    %17 = vector.load %arg2[%c2, %c0_13, %c0_14] : memref<7x128x128xf32, #tpu.memory_space<vmem>>, vector<1x128x128xf32>
    %18 = vector.shape_cast %17 : vector<1x128x128xf32> to vector<128x128xf32>
    %cst_15 = arith.constant dense<0.000000e+00> : vector<256x128xf32>
    %19 = tpu.matmul %16, %18, %cst_15 {dimension_numbers = #tpu.dot_dimension_numbers<[1], [0], [0], [1], [0, 0, 1, 1], [], []>} : vector<256x128xf32>, vector<128x128xf32>, vector<256x128xf32> -> vector<256x128xf32>
    %c2_16 = arith.constant 2 : index
    %c0_17 = arith.constant 0 : index
    %c0_18 = arith.constant 0 : index
    %20 = vector.load %arg3[%c2_16, %c0_17, %c0_18] : memref<7x1x128xf32, #tpu.memory_space<vmem>>, vector<1x1x128xf32>
    %21 = vector.shape_cast %20 : vector<1x1x128xf32> to vector<1x128xf32>
    %22 = vector.broadcast %21 : vector<1x128xf32> to vector<256x128xf32>
    %23 = arith.addf %19, %22 : vector<256x128xf32>
    %24 = math.tanh %23 : vector<256x128xf32>
    %c3 = arith.constant 3 : index
    %c0_19 = arith.constant 0 : index
    %c0_20 = arith.constant 0 : index
    %25 = vector.load %arg2[%c3, %c0_19, %c0_20] : memref<7x128x128xf32, #tpu.memory_space<vmem>>, vector<1x128x128xf32>
    %26 = vector.shape_cast %25 : vector<1x128x128xf32> to vector<128x128xf32>
    %cst_21 = arith.constant dense<0.000000e+00> : vector<256x128xf32>
    %27 = tpu.matmul %24, %26, %cst_21 {dimension_numbers = #tpu.dot_dimension_numbers<[1], [0], [0], [1], [0, 0, 1, 1], [], []>} : vector<256x128xf32>, vector<128x128xf32>, vector<256x128xf32> -> vector<256x128xf32>
    %c3_22 = arith.constant 3 : index
    %c0_23 = arith.constant 0 : index
    %c0_24 = arith.constant 0 : index
    %28 = vector.load %arg3[%c3_22, %c0_23, %c0_24] : memref<7x1x128xf32, #tpu.memory_space<vmem>>, vector<1x1x128xf32>
    %29 = vector.shape_cast %28 : vector<1x1x128xf32> to vector<1x128xf32>
    %30 = vector.broadcast %29 : vector<1x128xf32> to vector<256x128xf32>
    %31 = arith.addf %27, %30 : vector<256x128xf32>
    %32 = math.tanh %31 : vector<256x128xf32>
    %c4 = arith.constant 4 : index
    %c0_25 = arith.constant 0 : index
    %c0_26 = arith.constant 0 : index
    %33 = vector.load %arg2[%c4, %c0_25, %c0_26] : memref<7x128x128xf32, #tpu.memory_space<vmem>>, vector<1x128x128xf32>
    %34 = vector.shape_cast %33 : vector<1x128x128xf32> to vector<128x128xf32>
    %cst_27 = arith.constant dense<0.000000e+00> : vector<256x128xf32>
    %35 = tpu.matmul %32, %34, %cst_27 {dimension_numbers = #tpu.dot_dimension_numbers<[1], [0], [0], [1], [0, 0, 1, 1], [], []>} : vector<256x128xf32>, vector<128x128xf32>, vector<256x128xf32> -> vector<256x128xf32>
    %c4_28 = arith.constant 4 : index
    %c0_29 = arith.constant 0 : index
    %c0_30 = arith.constant 0 : index
    %36 = vector.load %arg3[%c4_28, %c0_29, %c0_30] : memref<7x1x128xf32, #tpu.memory_space<vmem>>, vector<1x1x128xf32>
    %37 = vector.shape_cast %36 : vector<1x1x128xf32> to vector<1x128xf32>
    %38 = vector.broadcast %37 : vector<1x128xf32> to vector<256x128xf32>
    %39 = arith.addf %35, %38 : vector<256x128xf32>
    %40 = math.tanh %39 : vector<256x128xf32>
    %c5 = arith.constant 5 : index
    %c0_31 = arith.constant 0 : index
    %c0_32 = arith.constant 0 : index
    %41 = vector.load %arg2[%c5, %c0_31, %c0_32] : memref<7x128x128xf32, #tpu.memory_space<vmem>>, vector<1x128x128xf32>
    %42 = vector.shape_cast %41 : vector<1x128x128xf32> to vector<128x128xf32>
    %cst_33 = arith.constant dense<0.000000e+00> : vector<256x128xf32>
    %43 = tpu.matmul %40, %42, %cst_33 {dimension_numbers = #tpu.dot_dimension_numbers<[1], [0], [0], [1], [0, 0, 1, 1], [], []>} : vector<256x128xf32>, vector<128x128xf32>, vector<256x128xf32> -> vector<256x128xf32>
    %c5_34 = arith.constant 5 : index
    %c0_35 = arith.constant 0 : index
    %c0_36 = arith.constant 0 : index
    %44 = vector.load %arg3[%c5_34, %c0_35, %c0_36] : memref<7x1x128xf32, #tpu.memory_space<vmem>>, vector<1x1x128xf32>
    %45 = vector.shape_cast %44 : vector<1x1x128xf32> to vector<1x128xf32>
    %46 = vector.broadcast %45 : vector<1x128xf32> to vector<256x128xf32>
    %47 = arith.addf %43, %46 : vector<256x128xf32>
    %48 = math.tanh %47 : vector<256x128xf32>
    %c6 = arith.constant 6 : index
    %c0_37 = arith.constant 0 : index
    %c0_38 = arith.constant 0 : index
    %49 = vector.load %arg2[%c6, %c0_37, %c0_38] : memref<7x128x128xf32, #tpu.memory_space<vmem>>, vector<1x128x128xf32>
    %50 = vector.shape_cast %49 : vector<1x128x128xf32> to vector<128x128xf32>
    %cst_39 = arith.constant dense<0.000000e+00> : vector<256x128xf32>
    %51 = tpu.matmul %48, %50, %cst_39 {dimension_numbers = #tpu.dot_dimension_numbers<[1], [0], [0], [1], [0, 0, 1, 1], [], []>} : vector<256x128xf32>, vector<128x128xf32>, vector<256x128xf32> -> vector<256x128xf32>
    %c6_40 = arith.constant 6 : index
    %c0_41 = arith.constant 0 : index
    %c0_42 = arith.constant 0 : index
    %52 = vector.load %arg3[%c6_40, %c0_41, %c0_42] : memref<7x1x128xf32, #tpu.memory_space<vmem>>, vector<1x1x128xf32>
    %53 = vector.shape_cast %52 : vector<1x1x128xf32> to vector<1x128xf32>
    %54 = vector.broadcast %53 : vector<1x128xf32> to vector<256x128xf32>
    %55 = arith.addf %51, %54 : vector<256x128xf32>
    %c0_43 = arith.constant 0 : index
    %c0_44 = arith.constant 0 : index
    %56 = vector.load %arg4[%c0_43, %c0_44] : memref<256x128xf32, #tpu.memory_space<vmem>>, vector<256x128xf32>
    tpu.vector_store %arg4[%c0_43, %c0_44], %55 {strides = array<i32>} : memref<256x128xf32, #tpu.memory_space<vmem>>, vector<256x128xf32>,
    return
  }
  func.func @transform_0(%arg0: i32) -> (i32, i32) {
    %c0_i32 = arith.constant 0 : i32
    %c0_i32_0 = arith.constant 0 : i32
    return %arg0, %c0_i32 : i32, i32
  }
  func.func @transform_1(%arg0: i32) -> (i32, i32, i32) {
    %c0_i32 = arith.constant 0 : i32
    %c0_i32_0 = arith.constant 0 : i32
    %c0_i32_1 = arith.constant 0 : i32
    %c0_i32_2 = arith.constant 0 : i32
    return %c0_i32, %c0_i32_0, %c0_i32_1 : i32, i32, i32
  }
  func.func @transform_2(%arg0: i32) -> (i32, i32, i32) {
    %c0_i32 = arith.constant 0 : i32
    %c0_i32_0 = arith.constant 0 : i32
    %c0_i32_1 = arith.constant 0 : i32
    %c0_i32_2 = arith.constant 0 : i32
    return %c0_i32, %c0_i32_0, %c0_i32_1 : i32, i32, i32
  }
  func.func @transform_3(%arg0: i32) -> (i32, i32) {
    %c0_i32 = arith.constant 0 : i32
    %c0_i32_0 = arith.constant 0 : i32
    return %arg0, %c0_i32 : i32, i32
  }
}

</mosaic_0001>

<llo_original>
// kernel: tpu_custom_call.1
$region0: #{tpu_custom_call.1}
  #allocation0 [shape = 'u32[]', space=smem, size = 0x4, offset = 0x4, fixed_abs, tag = 'smem constant byte address 0x4 - core index']
  #allocation1 [shape = 'u32[144,128]{1,0:T(1,128)}', space=vmem, size = 0x12000, scoped, tag = 'internal scratch']
  %s0 = inlined_call_operand.hbm [shape: f32[512,128], index: 0, kind: input, shape index: {}]
  %s1 = inlined_call_operand.hbm [shape: f32[7,128,128], index: 1, kind: input, shape index: {}]
  %s2 = inlined_call_operand.vmem [shape: f32[7,1,128], index: 2, kind: input, shape index: {}]
  %s3 = inlined_call_operand.hbm [shape: f32[512,128], index: 3, kind: output, shape index: {}]
  %s4 = sld [smem:[#allocation0]]
  $region53: #{tpu_custom_call.1} parent=0
    _
  %s6 = ssub.s32 1, %s4
  %s7 = scalar_select 0, %s6, %s4
  $region1: #{tpu_custom_call.1} parent=0
    #allocation2 [shape = 'u8[262144]{0}', space=vmem, size = 0x40000, scoped, tag = 'input window, operand 0']
    #allocation3 [shape = 's32[2]{0}', space=sflag, size = 0x8, scoped, tag = 'scoped memory for tpu_custom_call.1']
    #allocation4 [shape = 's32[2]{0}', space=sflag, size = 0x8, scoped, tag = 'scoped memory for tpu_custom_call.1']
    #allocation5 [shape = 'u8[458752]{0}', space=vmem, size = 0x70000, scoped, tag = 'input window, operand 1, single buffered']
    #allocation6 [shape = 's32[1]{0}', space=sflag, size = 0x4, scoped, tag = 'scoped memory for tpu_custom_call.1']
    #allocation7 [shape = 'u8[262144]{0}', space=vmem, size = 0x40000, scoped, tag = 'output window, operand 0']
    %8 = vsyncpa [#allocation3], 0
    %s9 = scalar_lea.sflag [#allocation3], 1
    %10 = vsyncpa %s9, 0
    %11 = vsyncpa [#allocation6], 0
    %12 = vsyncpa [#allocation4], 0
    %s13 = scalar_lea.sflag [#allocation4], 1
    %14 = vsyncpa %s13, 0
    loop: start=0, step=1, limit=4
    $region2: #{tpu_custom_call.1} parent=1 // loop_pre_header
      _
    $region3: #{tpu_custom_call.1} parent=1 // loop_header
      %s16 = sphi 0, %s20
      %p17 = scmp.ge.s32.totalorder %s16, 4
      %s26 = sphi 0, %s28
      %s29 = sphi 0, %s26
      %s30 = sphi 0, %s29
      %s46 = sphi 0, %s30
      %s50 = sphi 0, %s50
      %s52 = sphi 0, %s50
      %s53 = sphi 0, %s52
      %s67 = sphi 0, %s53
      %s71 = sphi 0, %s71
      %s73 = sphi 0, %s71
      %s74 = sphi 0, %s73
      %s88 = sphi 0, %s74
      %s94 = sphi 0, %s96
      %s97 = sphi 0, %s94
      %s98 = sphi 0, %s97
      %s114 = sphi 0, %s98
    $region4: #{tpu_custom_call.1} parent=1 // loop_header_branch
      %19 = sbr.rel (%p17) target = $region8
    $region5: #{tpu_custom_call.1} parent=1 // loop_body
      %s21 = ssub.s32 %s16, 1
      %s22 = ssub.s32 %s16, 2
      %s23 = sadd.s32 %s16, 1
      %s24 = ssub.s32 %s16, %s23
      %p25 = scmp.eq.s32.totalorder %s24, 0
      %s27 = sadd.s32 %s26, 1
      %s28 = scalar_select %p25, %s26, %s27
      %p31 = pneg %p25
      %p32 = scmp.eq.s32.totalorder %s16, 1
      %p33 = por %p31, %p32
      %p34 = scmp.ne.s32.totalorder %s26, %s29
      %p35 = scmp.eq.s32.totalorder %s16, 0
      %p36 = por %p34, %p35
      %p37 = scmp.ne.s32.totalorder %s26, %s29
      %p38 = scmp.eq.s32.totalorder %s21, 1
      %p39 = por %p37, %p38
      %p40 = scmp.ne.s32.totalorder %s29, %s30
      %p41 = scmp.eq.s32.totalorder %s21, 0
      %p42 = por %p40, %p41
      %p43 = scmp.ne.s32.totalorder %s29, %s30
      %p44 = scmp.eq.s32.totalorder %s22, 1
      %p45 = por %p43, %p44
      %p47 = scmp.ne.s32.totalorder %s30, %s46
      %p48 = scmp.eq.s32.totalorder %s22, 0
      %p49 = por %p47, %p48
      %s51 = sadd.s32 %s50, 1
      %p54 = scmp.eq.s32.totalorder %s16, 1
      %p55 = scmp.ne.s32.totalorder %s50, %s52
      %p56 = scmp.eq.s32.totalorder %s16, 0
      %p57 = por %p55, %p56
      %p58 = scmp.ne.s32.totalorder %s50, %s52
      %p59 = scmp.eq.s32.totalorder %s21, 1
      %p60 = por %p58, %p59
      %p61 = scmp.ne.s32.totalorder %s52, %s53
      %p62 = scmp.eq.s32.totalorder %s21, 0
      %p63 = por %p61, %p62
      %p64 = scmp.ne.s32.totalorder %s52, %s53
      %p65 = scmp.eq.s32.totalorder %s22, 1
      %p66 = por %p64, %p65
      %p68 = scmp.ne.s32.totalorder %s53, %s67
      %p69 = scmp.eq.s32.totalorder %s22, 0
      %p70 = por %p68, %p69
      %s72 = sadd.s32 %s71, 1
      %p75 = scmp.eq.s32.totalorder %s16, 1
      %p76 = scmp.ne.s32.totalorder %s71, %s73
      %p77 = scmp.eq.s32.totalorder %s16, 0
      %p78 = por %p76, %p77
      %p79 = scmp.ne.s32.totalorder %s71, %s73
      %p80 = scmp.eq.s32.totalorder %s21, 1
      %p81 = por %p79, %p80
      %p82 = scmp.ne.s32.totalorder %s73, %s74
      %p83 = scmp.eq.s32.totalorder %s21, 0
      %p84 = por %p82, %p83
      %p85 = scmp.ne.s32.totalorder %s73, %s74
      %p86 = scmp.eq.s32.totalorder %s22, 1
      %p87 = por %p85, %p86
      %p89 = scmp.ne.s32.totalorder %s74, %s88
      %p90 = scmp.eq.s32.totalorder %s22, 0
      %p91 = por %p89, %p90
      %s92 = ssub.s32 %s16, %s23
      %p93 = scmp.eq.s32.totalorder %s92, 0
      %s95 = sadd.s32 %s94, 1
      %s96 = scalar_select %p93, %s94, %s95
      %p99 = pneg %p93
      %p100 = scmp.eq.s32.totalorder %s16, 1
      %p101 = por %p99, %p100
      %p102 = scmp.ne.s32.totalorder %s94, %s97
      %p103 = scmp.eq.s32.totalorder %s16, 0
      %p104 = por %p102, %p103
      %p105 = scmp.ne.s32.totalorder %s94, %s97
      %p106 = scmp.eq.s32.totalorder %s21, 1
      %p107 = por %p105, %p106
      %p108 = scmp.ne.s32.totalorder %s97, %s98
      %p109 = scmp.eq.s32.totalorder %s21, 0
      %p110 = por %p108, %p109
      %p111 = scmp.ne.s32.totalorder %s97, %s98
      %p112 = scmp.eq.s32.totalorder %s22, 1
      %p113 = por %p111, %p112
      %p115 = scmp.ne.s32.totalorder %s98, %s114
      %p116 = scmp.eq.s32.totalorder %s22, 0
      %p117 = por %p115, %p116
      %p118 = scmp.le.s32.totalorder 1, %s16
      %p119 = scmp.lt.s32.totalorder %s16, 3
      %p120 = pnand %p118, %p119
      %p121 = pneg %p120
      // Predicated region
      $region9: #{tpu_custom_call.1} parent=5 // pred_check
        _
      $region10: #{tpu_custom_call.1} parent=5 // pred_check_branch
        %123 = sbr.rel (%p120) target = $region12
      $region11: #{tpu_custom_call.1} parent=5 // pred_region
        %s124 = ssub.s32 %s16, 1
        // Predicated region
        $region13: #{tpu_custom_call.1} parent=11 // pred_check
          %p125 = pneg %p63
        $region14: #{tpu_custom_call.1} parent=11 // pred_check_branch
          %127 = sbr.rel (%p125) target = $region16
        $region15: #{tpu_custom_call.1} parent=11 // pred_region
          %s129 = ssub.s32 14336, 14336
          %130 = vsyncadd [#allocation6], %s129
          %s131 = sshll.u32 [#allocation5], 4
          %s132 = int_to_ptr.vmem [resolvable:$true] %s131
          %137 = dma.hbm_to_vmem [thread:$0]  %s1, 14336, %s132, [#allocation6], 128, 128, 8
        $region16: #{tpu_custom_call.1} parent=11 // pred_fallthru
          _
        // Predicated region
        $region17: #{tpu_custom_call.1} parent=11 // pred_check
          %p138 = pneg %p84
        $region18: #{tpu_custom_call.1} parent=11 // pred_check_branch
          %140 = sbr.rel (%p138) target = $region20
        $region19: #{tpu_custom_call.1} parent=11 // pred_region
          _
        $region20: #{tpu_custom_call.1} parent=11 // pred_fallthru
          _
      $region12: #{tpu_custom_call.1} parent=5 // pred_fallthru
        _
      %p141 = scmp.lt.s32.totalorder %s16, 2
      // Predicated region
      $region21: #{tpu_custom_call.1} parent=5 // pred_check
        %p142 = pneg %p141
      $region22: #{tpu_custom_call.1} parent=5 // pred_check_branch
        %144 = sbr.rel (%p142) target = $region24
      $region23: #{tpu_custom_call.1} parent=5 // pred_region
        // Predicated region
        $region25: #{tpu_custom_call.1} parent=23 // pred_check
          %p145 = pneg %p36
        $region26: #{tpu_custom_call.1} parent=23 // pred_check_branch
          %147 = sbr.rel (%p145) target = $region28
        $region27: #{tpu_custom_call.1} parent=23 // pred_region
          %s148 = sand.u32 %s26, 1
          %s149 = scalar_lea.sflag [#allocation3], %s148
          %s150 = sand.u32 %s26, 1
          %s151 = smul.addr %s150, 256
          %s152 = scalar_lea.vmem [#allocation2], %s151
          %s153 = smul.u32 32, %s16
          %s155 = ssub.s32 4096, 4096
          %156 = vsyncadd %s149, %s155
          %s157 = smul.addr %s153, 128
          %s158 = scalar_lea.hbm %s0, %s157
          %s159 = sshll.u32 %s152, 4
          %s160 = int_to_ptr.vmem [resolvable:$true] %s159
          %165 = dma.hbm_to_vmem [thread:$0]  %s158, 4096, %s160, %s149, 128, 128, 8
        $region28: #{tpu_custom_call.1} parent=23 // pred_fallthru
          _
      $region24: #{tpu_custom_call.1} parent=5 // pred_fallthru
        _
      %p166 = scmp.le.s32.totalorder 1, %s16
      %p167 = scmp.lt.s32.totalorder %s16, 3
      %p168 = pnand %p166, %p167
      %p169 = pneg %p168
      // Predicated region
      $region29: #{tpu_custom_call.1} parent=5 // pred_check
        _
      $region30: #{tpu_custom_call.1} parent=5 // pred_check_branch
        %171 = sbr.rel (%p168) target = $region32
      $region31: #{tpu_custom_call.1} parent=5 // pred_region
        %s172 = ssub.s32 %s16, 1
        %s173 = sand.u32 %s29, 1
        %s174 = scalar_lea.sflag [#allocation3], %s173
        %s175 = sand.u32 %s29, 1
        %s176 = smul.addr %s175, 256
        %s177 = scalar_lea.vmem [#allocation2], %s176
        // Predicated region
        $region33: #{tpu_custom_call.1} parent=31 // pred_check
          %p178 = pneg %p42
        $region34: #{tpu_custom_call.1} parent=31 // pred_check_branch
          %180 = sbr.rel (%p178) target = $region36
        $region35: #{tpu_custom_call.1} parent=31 // pred_region
          %181 = dma.done %s174, 4096
        $region36: #{tpu_custom_call.1} parent=31 // pred_fallthru
          _
        // Predicated region
        $region37: #{tpu_custom_call.1} parent=31 // pred_check
          %p182 = pneg %p63
        $region38: #{tpu_custom_call.1} parent=31 // pred_check_branch
          %184 = sbr.rel (%p182) target = $region40
        $region39: #{tpu_custom_call.1} parent=31 // pred_region
          %185 = dma.done [#allocation6], 14336
        $region40: #{tpu_custom_call.1} parent=31 // pred_fallthru
          _
        %s186 = sand.u32 %s29, 1
        %s187 = scalar_lea.sflag [#allocation3], %s186
        %s188 = sand.u32 %s29, 1
        %s189 = smul.addr %s188, 256
        %s190 = scalar_lea.vmem [#allocation2], %s189
        %p191 = pneg %p42
        %p192 = pneg %p39
        %p193 = pneg %p63
        %p194 = pneg %p60
        %p195 = pneg %p84
        %p196 = pneg %p81
        %p197 = pneg %p110
        %p198 = pneg %p107
        %s199 = sand.u32 %s97, 1
        %s200 = scalar_lea.sflag [#allocation4], %s199
        %s201 = sand.u32 %s97, 1
        %s202 = smul.addr %s201, 256
        %s203 = scalar_lea.vmem [#allocation7], %s202
        %s204 = smul.u32 32, %s21
        %s205 = smul.u32 32, %s21
        %v206 = vld [vmem:[%s177] sm:$0xff]
        %v207 = vld [vmem:[%s177 + $0x8] sm:$0xff]
        %v208 = vld [vmem:[%s177 + $0x10] sm:$0xff]
        %v209 = vld [vmem:[%s177 + $0x18] sm:$0xff]
        %v210 = vld [vmem:[%s177 + $0x20] sm:$0xff]
        %v211 = vld [vmem:[%s177 + $0x28] sm:$0xff]
        %v212 = vld [vmem:[%s177 + $0x30] sm:$0xff]
        %v213 = vld [vmem:[%s177 + $0x38] sm:$0xff]
        %v214 = vld [vmem:[%s177 + $0x40] sm:$0xff]
        %v215 = vld [vmem:[%s177 + $0x48] sm:$0xff]
        %v216 = vld [vmem:[%s177 + $0x50] sm:$0xff]
        %v217 = vld [vmem:[%s177 + $0x58] sm:$0xff]
        %v218 = vld [vmem:[%s177 + $0x60] sm:$0xff]
        %v219 = vld [vmem:[%s177 + $0x68] sm:$0xff]
        %v220 = vld [vmem:[%s177 + $0x70] sm:$0xff]
        %v221 = vld [vmem:[%s177 + $0x78] sm:$0xff]
        %v222 = vld [vmem:[%s177 + $0x80] sm:$0xff]
        %v223 = vld [vmem:[%s177 + $0x88] sm:$0xff]
        %v224 = vld [vmem:[%s177 + $0x90] sm:$0xff]
        %v225 = vld [vmem:[%s177 + $0x98] sm:$0xff]
        %v226 = vld [vmem:[%s177 + $0xa0] sm:$0xff]
        %v227 = vld [vmem:[%s177 + $0xa8] sm:$0xff]
        %v228 = vld [vmem:[%s177 + $0xb0] sm:$0xff]
        %v229 = vld [vmem:[%s177 + $0xb8] sm:$0xff]
        %v230 = vld [vmem:[%s177 + $0xc0] sm:$0xff]
        %v231 = vld [vmem:[%s177 + $0xc8] sm:$0xff]
        %v232 = vld [vmem:[%s177 + $0xd0] sm:$0xff]
        %v233 = vld [vmem:[%s177 + $0xd8] sm:$0xff]
        %v234 = vld [vmem:[%s177 + $0xe0] sm:$0xff]
        %v235 = vld [vmem:[%s177 + $0xe8] sm:$0xff]
        %v236 = vld [vmem:[%s177 + $0xf0] sm:$0xff]
        %v237 = vld [vmem:[%s177 + $0xf8] sm:$0xff]
        %v238 = vld [vmem:[#allocation5] sm:$0xff]
        %v239 = vld [vmem:[#allocation5 + $0x8] sm:$0xff]
        %v240 = vld [vmem:[#allocation5 + $0x10] sm:$0xff]
        %v241 = vld [vmem:[#allocation5 + $0x18] sm:$0xff]
        %v242 = vld [vmem:[#allocation5 + $0x20] sm:$0xff]
        %v243 = vld [vmem:[#allocation5 + $0x28] sm:$0xff]
        %v244 = vld [vmem:[#allocation5 + $0x30] sm:$0xff]
        %v245 = vld [vmem:[#allocation5 + $0x38] sm:$0xff]
        %v246 = vld [vmem:[#allocation5 + $0x40] sm:$0xff]
        %v247 = vld [vmem:[#allocation5 + $0x48] sm:$0xff]
        %v248 = vld [vmem:[#allocation5 + $0x50] sm:$0xff]
        %v249 = vld [vmem:[#allocation5 + $0x58] sm:$0xff]
        %v250 = vld [vmem:[#allocation5 + $0x60] sm:$0xff]
        %v251 = vld [vmem:[#allocation5 + $0x68] sm:$0xff]
        %v252 = vld [vmem:[#allocation5 + $0x70] sm:$0xff]
        %v253 = vld [vmem:[#allocation5 + $0x78] sm:$0xff]
        %v254 = vld [vmem:[%s2] sm:$0x1]
        %v256 = vlaneseq
        %v257 = vshrl.u32 %v256, 7
        %v258 = vsub.s32 0, %v257
        %v259 = vrot.slane %v254, %v258
        %261 = vmatprep.subr.mxu0 0.0
        %262 = vmatpush1.msra.mxu0 %v238
        %263 = vmatprep.subr.mxu0 0.0
        %264 = vmatpush1.msra.mxu0 %v239
        %265 = vmatprep.subr.mxu0 0.0
        %266 = vmatpush1.msra.mxu0 %v240
        %267 = vmatprep.subr.mxu0 0.0
        %268 = vmatpush1.msra.mxu0 %v241
        %269 = vmatprep.subr.mxu0 0.0
        %270 = vmatpush1.msra.mxu0 %v242
        %271 = vmatprep.subr.mxu0 0.0
        %272 = vmatpush1.msra.mxu0 %v243
        %273 = vmatprep.subr.mxu0 0.0
        %274 = vmatpush1.msra.mxu0 %v244
        %275 = vmatprep.subr.mxu0 0.0
        %276 = vmatpush1.msra.mxu0 %v245
        %277 = vmatprep.subr.mxu0 0.0
        %278 = vmatpush1.msra.mxu0 %v246
        %279 = vmatprep.subr.mxu0 0.0
        %280 = vmatpush1.msra.mxu0 %v247
        %281 = vmatprep.subr.mxu0 0.0
        %282 = vmatpush1.msra.mxu0 %v248
        %283 = vmatprep.subr.mxu0 0.0
        %284 = vmatpush1.msra.mxu0 %v249
        %285 = vmatprep.subr.mxu0 0.0
        %286 = vmatpush1.msra.mxu0 %v250
        %287 = vmatprep.subr.mxu0 0.0
        %288 = vmatpush1.msra.mxu0 %v251
        %289 = vmatprep.subr.mxu0 0.0
        %290 = vmatpush1.msra.mxu0 %v252
        %291 = vmatprep.subr.mxu0 0.0
        %292 = vmatpush1.msra.mxu0 %v253
        %293 = vmatprep.subr.mxu0 0.0
        %294 = vmatpush1.msra.mxu0 0.0
        %295 = vmatprep.subr.mxu0 0.0
        %296 = vmatpush1.msra.mxu0 0.0
        %297 = vmatprep.subr.mxu0 0.0
        %298 = vmatpush1.msra.mxu0 0.0
        %299 = vmatprep.subr.mxu0 0.0
        %300 = vmatpush1.msra.mxu0 0.0
        %301 = vmatprep.subr.mxu0 0.0
        %302 = vmatpush1.msra.mxu0 0.0
        %303 = vmatprep.subr.mxu0 0.0
        %304 = vmatpush1.msra.mxu0 0.0
        %305 = vmatprep.subr.mxu0 0.0
        %306 = vmatpush1.msra.mxu0 0.0
        %307 = vmatprep.subr.mxu0 0.0
        %308 = vmatpush1.msra.mxu0 0.0
        %309 = vmatprep.subr.mxu0 0.0
        %310 = vmatpush1.msra.mxu0 0.0
        %311 = vmatprep.subr.mxu0 0.0
        %312 = vmatpush1.msra.mxu0 0.0
        %313 = vmatprep.subr.mxu0 0.0
        %314 = vmatpush1.msra.mxu0 0.0
        %315 = vmatprep.subr.mxu0 0.0
        %316 = vmatpush1.msra.mxu0 0.0
        %317 = vmatprep.subr.mxu0 0.0
        %318 = vmatpush1.msra.mxu0 0.0
        %319 = vmatprep.subr.mxu0 0.0
        %320 = vmatpush1.msra.mxu0 0.0
        %321 = vmatprep.subr.mxu0 0.0
        %322 = vmatpush1.msra.mxu0 0.0
        %323 = vmatprep.subr.mxu0 0.0
        %324 = vmatpush1.msra.mxu0 0.0
        %325 = vmatprep.mubr.f32.mxu0 0.0
        %326 = vmatmul.mubr.f32.gmra.mrb[0].mxu0 %v206
        %v327 = vpop.f32.mrb[0].mxu0
        %v328 = vadd.f32 %v259, %v327
        %v329 = vpop.f32.mrb[0].mxu0
        %330 = vmatprep.mubr.f32.mxu0 0.0
        %331 = vmatmul.mubr.f32.gmra.mrb[0].mxu0 %v207
        %v332 = vpop.f32.mrb[0].mxu0
        %v333 = vadd.f32 %v259, %v332
        %v334 = vpop.f32.mrb[0].mxu0
        %335 = vmatprep.mubr.f32.mxu0 0.0
        %336 = vmatmul.mubr.f32.gmra.mrb[0].mxu0 %v208
        %v337 = vpop.f32.mrb[0].mxu0
        %v338 = vadd.f32 %v259, %v337
        %v339 = vpop.f32.mrb[0].mxu0
        %340 = vmatprep.mubr.f32.mxu0 0.0
        %341 = vmatmul.mubr.f32.gmra.mrb[0].mxu0 %v209
        %v342 = vpop.f32.mrb[0].mxu0
        %v343 = vadd.f32 %v259, %v342
        %v344 = vpop.f32.mrb[0].mxu0
        %345 = vmatprep.mubr.f32.mxu0 0.0
        %346 = vmatmul.mubr.f32.gmra.mrb[0].mxu0 %v210
        %v347 = vpop.f32.mrb[0].mxu0
        %v348 = vadd.f32 %v259, %v347
        %v349 = vpop.f32.mrb[0].mxu0
        %350 = vmatprep.mubr.f32.mxu0 0.0
        %351 = vmatmul.mubr.f32.gmra.mrb[0].mxu0 %v211
        %v352 = vpop.f32.mrb[0].mxu0
        %v353 = vadd.f32 %v259, %v352
        %v354 = vpop.f32.mrb[0].mxu0
        %355 = vmatprep.mubr.f32.mxu0 0.0
        %356 = vmatmul.mubr.f32.gmra.mrb[0].mxu0 %v212
        %v357 = vpop.f32.mrb[0].mxu0
        %v358 = vadd.f32 %v259, %v357
        %v359 = vpop.f32.mrb[0].mxu0
        %360 = vmatprep.mubr.f32.mxu0 0.0
        %361 = vmatmul.mubr.f32.gmra.mrb[0].mxu0 %v213
        %v362 = vpop.f32.mrb[0].mxu0
        %v363 = vadd.f32 %v259, %v362
        %v364 = vpop.f32.mrb[0].mxu0
        %365 = vmatprep.mubr.f32.mxu0 0.0
        %366 = vmatmul.mubr.f32.gmra.mrb[0].mxu0 %v214
        %v367 = vpop.f32.mrb[0].mxu0
        %v368 = vadd.f32 %v259, %v367
        %v369 = vpop.f32.mrb[0].mxu0
        %370 = vmatprep.mubr.f32.mxu0 0.0
        %371 = vmatmul.mubr.f32.gmra.mrb[0].mxu0 %v215
        %v372 = vpop.f32.mrb[0].mxu0
        %v373 = vadd.f32 %v259, %v372
        %v374 = vpop.f32.mrb[0].mxu0
        %375 = vmatprep.mubr.f32.mxu0 0.0
        %376 = vmatmul.mubr.f32.gmra.mrb[0].mxu0 %v216
        %v377 = vpop.f32.mrb[0].mxu0
        %v378 = vadd.f32 %v259, %v377
        %v379 = vpop.f32.mrb[0].mxu0
        %380 = vmatprep.mubr.f32.mxu0 0.0
        %381 = vmatmul.mubr.f32.gmra.mrb[0].mxu0 %v217
        %v382 = vpop.f32.mrb[0].mxu0
        %v383 = vadd.f32 %v259, %v382
        %v384 = vpop.f32.mrb[0].mxu0
        %385 = vmatprep.mubr.f32.mxu0 0.0
        %386 = vmatmul.mubr.f32.gmra.mrb[0].mxu0 %v218
        %v387 = vpop.f32.mrb[0].mxu0
        %v388 = vadd.f32 %v259, %v387
        %v389 = vpop.f32.mrb[0].mxu0
        %390 = vmatprep.mubr.f32.mxu0 0.0
        %391 = vmatmul.mubr.f32.gmra.mrb[0].mxu0 %v219
        %v392 = vpop.f32.mrb[0].mxu0
        %v393 = vadd.f32 %v259, %v392
        %v394 = vpop.f32.mrb[0].mxu0
        %395 = vmatprep.mubr.f32.mxu0 0.0
        %396 = vmatmul.mubr.f32.gmra.mrb[0].mxu0 %v220
        %v397 = vpop.f32.mrb[0].mxu0
        %v398 = vadd.f32 %v259, %v397
        %v399 = vpop.f32.mrb[0].mxu0
        %400 = vmatprep.mubr.f32.mxu0 0.0
        %401 = vmatmul.mubr.f32.gmra.mrb[0].mxu0 %v221
        %v402 = vpop.f32.mrb[0].mxu0
        %v403 = vadd.f32 %v259, %v402
        %v404 = vpop.f32.mrb[0].mxu0
        %405 = vmatprep.mubr.f32.mxu0 0.0
        %406 = vmatmul.mubr.f32.gmra.mrb[0].mxu0 %v222
        %v407 = vpop.f32.mrb[0].mxu0
        %v408 = vadd.f32 %v259, %v407
        %v409 = vpop.f32.mrb[0].mxu0
        %410 = vmatprep.mubr.f32.mxu0 0.0
        %411 = vmatmul.mubr.f32.gmra.mrb[0].mxu0 %v223
        %v412 = vpop.f32.mrb[0].mxu0
        %v413 = vadd.f32 %v259, %v412
        %v414 = vpop.f32.mrb[0].mxu0
        %415 = vmatprep.mubr.f32.mxu0 0.0
        %416 = vmatmul.mubr.f32.gmra.mrb[0].mxu0 %v224
        %v417 = vpop.f32.mrb[0].mxu0
        %v418 = vadd.f32 %v259, %v417
        %v419 = vpop.f32.mrb[0].mxu0
        %420 = vmatprep.mubr.f32.mxu0 0.0
        %421 = vmatmul.mubr.f32.gmra.mrb[0].mxu0 %v225
        %v422 = vpop.f32.mrb[0].mxu0
        %v423 = vadd.f32 %v259, %v422
        %v424 = vpop.f32.mrb[0].mxu0
        %425 = vmatprep.mubr.f32.mxu0 0.0
        %426 = vmatmul.mubr.f32.gmra.mrb[0].mxu0 %v226
        %v427 = vpop.f32.mrb[0].mxu0
        %v428 = vadd.f32 %v259, %v427
        %v429 = vpop.f32.mrb[0].mxu0
        %430 = vmatprep.mubr.f32.mxu0 0.0
        %431 = vmatmul.mubr.f32.gmra.mrb[0].mxu0 %v227
        %v432 = vpop.f32.mrb[0].mxu0
        %v433 = vadd.f32 %v259, %v432
        %v434 = vpop.f32.mrb[0].mxu0
        %435 = vmatprep.mubr.f32.mxu0 0.0
        %436 = vmatmul.mubr.f32.gmra.mrb[0].mxu0 %v228
        %v437 = vpop.f32.mrb[0].mxu0
        %v438 = vadd.f32 %v259, %v437
        %v439 = vpop.f32.mrb[0].mxu0
        %440 = vmatprep.mubr.f32.mxu0 0.0
        %441 = vmatmul.mubr.f32.gmra.mrb[0].mxu0 %v229
        %v442 = vpop.f32.mrb[0].mxu0
        %v443 = vadd.f32 %v259, %v442
        %v444 = vpop.f32.mrb[0].mxu0
        %445 = vmatprep.mubr.f32.mxu0 0.0
        %446 = vmatmul.mubr.f32.gmra.mrb[0].mxu0 %v230
        %v447 = vpop.f32.mrb[0].mxu0
        %v448 = vadd.f32 %v259, %v447
        %v449 = vpop.f32.mrb[0].mxu0
        %450 = vmatprep.mubr.f32.mxu0 0.0
        %451 = vmatmul.mubr.f32.gmra.mrb[0].mxu0 %v231
        %v452 = vpop.f32.mrb[0].mxu0
        %v453 = vadd.f32 %v259, %v452
        %v454 = vpop.f32.mrb[0].mxu0
        %455 = vmatprep.mubr.f32.mxu0 0.0
        %456 = vmatmul.mubr.f32.gmra.mrb[0].mxu0 %v232
        %v457 = vpop.f32.mrb[0].mxu0
        %v458 = vadd.f32 %v259, %v457
        %v459 = vpop.f32.mrb[0].mxu0
        %460 = vmatprep.mubr.f32.mxu0 0.0
        %461 = vmatmul.mubr.f32.gmra.mrb[0].mxu0 %v233
        %v462 = vpop.f32.mrb[0].mxu0
        %v463 = vadd.f32 %v259, %v462
        %v464 = vpop.f32.mrb[0].mxu0
        %465 = vmatprep.mubr.f32.mxu0 0.0
        %466 = vmatmul.mubr.f32.gmra.mrb[0].mxu0 %v234
        %v467 = vpop.f32.mrb[0].mxu0
        %v468 = vadd.f32 %v259, %v467
        %v469 = vpop.f32.mrb[0].mxu0
        %470 = vmatprep.mubr.f32.mxu0 0.0
        %471 = vmatmul.mubr.f32.gmra.mrb[0].mxu0 %v235
        %v472 = vpop.f32.mrb[0].mxu0
        %v473 = vadd.f32 %v259, %v472
        %v474 = vpop.f32.mrb[0].mxu0
        %475 = vmatprep.mubr.f32.mxu0 0.0
        %476 = vmatmul.mubr.f32.gmra.mrb[0].mxu0 %v236
        %v477 = vpop.f32.mrb[0].mxu0
        %v478 = vadd.f32 %v259, %v477
        %v479 = vpop.f32.mrb[0].mxu0
        %480 = vmatprep.mubr.f32.mxu0 0.0
        %481 = vmatmul.mubr.f32.gmra.mrb[0].mxu0 %v237
        %v482 = vpop.f32.mrb[0].mxu0
        %v483 = vadd.f32 %v259, %v482
        %v484 = vpop.f32.mrb[0].mxu0
        %485 = vdwg.mxu0
        %v486 = vtanh.pop %v328
        %v487 = vtanh.pop %v333
        %v488 = vtanh.pop %v338
        %v489 = vtanh.pop %v343
        %v490 = vtanh.pop %v348
        %v491 = vtanh.pop %v353
        %v492 = vtanh.pop %v358
        %v493 = vtanh.pop %v363
        %v494 = vtanh.pop %v368
        %v495 = vtanh.pop %v373
        %v496 = vtanh.pop %v378
        %v497 = vtanh.pop %v383
        %v498 = vtanh.pop %v388
        %v499 = vtanh.pop %v393
        %v500 = vtanh.pop %v398
        %v501 = vtanh.pop %v403
        %v502 = vtanh.pop %v408
        %v503 = vtanh.pop %v413
        %v504 = vtanh.pop %v418
        %v505 = vtanh.pop %v423
        %v506 = vtanh.pop %v428
        %v507 = vtanh.pop %v433
        %v508 = vtanh.pop %v438
        %v509 = vtanh.pop %v443
        %v510 = vtanh.pop %v448
        %v511 = vtanh.pop %v453
        %v512 = vtanh.pop %v458
        %v513 = vtanh.pop %v463
        %v514 = vtanh.pop %v468
        %v515 = vtanh.pop %v473
        %v516 = vtanh.pop %v478
        %v517 = vtanh.pop %v483
        %s518 = scalar_lea.vmem [#allocation5], 128
        %v519 = vld [vmem:[%s518] sm:$0xff]
        %v520 = vld [vmem:[%s518 + $0x8] sm:$0xff]
        %v521 = vld [vmem:[%s518 + $0x10] sm:$0xff]
        %v522 = vld [vmem:[%s518 + $0x18] sm:$0xff]
        %v523 = vld [vmem:[%s518 + $0x20] sm:$0xff]
        %v524 = vld [vmem:[%s518 + $0x28] sm:$0xff]
        %v525 = vld [vmem:[%s518 + $0x30] sm:$0xff]
        %v526 = vld [vmem:[%s518 + $0x38] sm:$0xff]
        %v527 = vld [vmem:[%s518 + $0x40] sm:$0xff]
        %v528 = vld [vmem:[%s518 + $0x48] sm:$0xff]
        %v529 = vld [vmem:[%s518 + $0x50] sm:$0xff]
        %v530 = vld [vmem:[%s518 + $0x58] sm:$0xff]
        %v531 = vld [vmem:[%s518 + $0x60] sm:$0xff]
        %v532 = vld [vmem:[%s518 + $0x68] sm:$0xff]
        %v533 = vld [vmem:[%s518 + $0x70] sm:$0xff]
        %v534 = vld [vmem:[%s518 + $0x78] sm:$0xff]
        %s535 = scalar_lea.vmem %s2, 1
        %v536 = vld [vmem:[%s535] sm:$0x1]
        %v538 = vlaneseq
        %v539 = vshrl.u32 %v538, 7
        %v540 = vsub.s32 0, %v539
        %v541 = vrot.slane %v536, %v540
        %543 = vmatprep.subr.mxu0 0.0
        %544 = vmatpush1.msra.mxu0 %v519
        %545 = vmatprep.subr.mxu0 0.0
        %546 = vmatpush1.msra.mxu0 %v520
        %547 = vmatprep.subr.mxu0 0.0
        %548 = vmatpush1.msra.mxu0 %v521
        %549 = vmatprep.subr.mxu0 0.0
        %550 = vmatpush1.msra.mxu0 %v522
        %551 = vmatprep.subr.mxu0 0.0
        %552 = vmatpush1.msra.mxu0 %v523
        %553 = vmatprep.subr.mxu0 0.0
        %554 = vmatpush1.msra.mxu0 %v524
        %555 = vmatprep.subr.mxu0 0.0
        %556 = vmatpush1.msra.mxu0 %v525
        %557 = vmatprep.subr.mxu0 0.0
        %558 = vmatpush1.msra.mxu0 %v526
        %559 = vmatprep.subr.mxu0 0.0
        %560 = vmatpush1.msra.mxu0 %v527
        %561 = vmatprep.subr.mxu0 0.0
        %562 = vmatpush1.msra.mxu0 %v528
        %563 = vmatprep.subr.mxu0 0.0
        %564 = vmatpush1.msra.mxu0 %v529
        %565 = vmatprep.subr.mxu0 0.0
        %566 = vmatpush1.msra.mxu0 %v530
        %567 = vmatprep.subr.mxu0 0.0
        %568 = vmatpush1.msra.mxu0 %v531
        %569 = vmatprep.subr.mxu0 0.0
        %570 = vmatpush1.msra.mxu0 %v532
        %571 = vmatprep.subr.mxu0 0.0
        %572 = vmatpush1.msra.mxu0 %v533
        %573 = vmatprep.subr.mxu0 0.0
        %574 = vmatpush1.msra.mxu0 %v534
        %575 = vmatprep.subr.mxu0 0.0
        %576 = vmatpush1.msra.mxu0 0.0
        %577 = vmatprep.subr.mxu0 0.0
        %578 = vmatpush1.msra.mxu0 0.0
        %579 = vmatprep.subr.mxu0 0.0
        %580 = vmatpush1.msra.mxu0 0.0
        %581 = vmatprep.subr.mxu0 0.0
        %582 = vmatpush1.msra.mxu0 0.0
        %583 = vmatprep.subr.mxu0 0.0
        %584 = vmatpush1.msra.mxu0 0.0
        %585 = vmatprep.subr.mxu0 0.0
        %586 = vmatpush1.msra.mxu0 0.0
        %587 = vmatprep.subr.mxu0 0.0
        %588 = vmatpush1.msra.mxu0 0.0
        %589 = vmatprep.subr.mxu0 0.0
        %590 = vmatpush1.msra.mxu0 0.0
        %591 = vmatprep.subr.mxu0 0.0
        %592 = vmatpush1.msra.mxu0 0.0
        %593 = vmatprep.subr.mxu0 0.0
        %594 = vmatpush1.msra.mxu0 0.0
        %595 = vmatprep.subr.mxu0 0.0
        %596 = vmatpush1.msra.mxu0 0.0
        %597 = vmatprep.subr.mxu0 0.0
        %598 = vmatpush1.msra.mxu0 0.0
        %599 = vmatprep.subr.mxu0 0.0
        %600 = vmatpush1.msra.mxu0 0.0
        %601 = vmatprep.subr.mxu0 0.0
        %602 = vmatpush1.msra.mxu0 0.0
        %603 = vmatprep.subr.mxu0 0.0
        %604 = vmatpush1.msra.mxu0 0.0
        %605 = vmatprep.subr.mxu0 0.0
        %606 = vmatpush1.msra.mxu0 0.0
        %607 = vmatprep.mubr.f32.mxu0 0.0
        %608 = vmatmul.mubr.f32.gmra.mrb[0].mxu0 %v486
        %v609 = vpop.f32.mrb[0].mxu0
        %v610 = vadd.f32 %v541, %v609
        %v611 = vpop.f32.mrb[0].mxu0
        %612 = vmatprep.mubr.f32.mxu0 0.0
        %613 = vmatmul.mubr.f32.gmra.mrb[0].mxu0 %v487
        %v614 = vpop.f32.mrb[0].mxu0
        %v615 = vadd.f32 %v541, %v614
        %v616 = vpop.f32.mrb[0].mxu0
        %617 = vmatprep.mubr.f32.mxu0 0.0
        %618 = vmatmul.mubr.f32.gmra.mrb[0].mxu0 %v488
        %v619 = vpop.f32.mrb[0].mxu0
        %v620 = vadd.f32 %v541, %v619
        %v621 = vpop.f32.mrb[0].mxu0
        %622 = vmatprep.mubr.f32.mxu0 0.0
        %623 = vmatmul.mubr.f32.gmra.mrb[0].mxu0 %v489
        %v624 = vpop.f32.mrb[0].mxu0
        %v625 = vadd.f32 %v541, %v624
        %v626 = vpop.f32.mrb[0].mxu0
        %627 = vmatprep.mubr.f32.mxu0 0.0
        %628 = vmatmul.mubr.f32.gmra.mrb[0].mxu0 %v490
        %v629 = vpop.f32.mrb[0].mxu0
        %v630 = vadd.f32 %v541, %v629
        %v631 = vpop.f32.mrb[0].mxu0
        %632 = vmatprep.mubr.f32.mxu0 0.0
        %633 = vmatmul.mubr.f32.gmra.mrb[0].mxu0 %v491
        %v634 = vpop.f32.mrb[0].mxu0
        %v635 = vadd.f32 %v541, %v634
        %v636 = vpop.f32.mrb[0].mxu0
        %637 = vmatprep.mubr.f32.mxu0 0.0
        %638 = vmatmul.mubr.f32.gmra.mrb[0].mxu0 %v492
        %v639 = vpop.f32.mrb[0].mxu0
        %v640 = vadd.f32 %v541, %v639
        %v641 = vpop.f32.mrb[0].mxu0
        %642 = vmatprep.mubr.f32.mxu0 0.0
        %643 = vmatmul.mubr.f32.gmra.mrb[0].mxu0 %v493
        %v644 = vpop.f32.mrb[0].mxu0
        %v645 = vadd.f32 %v541, %v644
        %v646 = vpop.f32.mrb[0].mxu0
        %647 = vmatprep.mubr.f32.mxu0 0.0
        %648 = vmatmul.mubr.f32.gmra.mrb[0].mxu0 %v494
        %v649 = vpop.f32.mrb[0].mxu0
        %v650 = vadd.f32 %v541, %v649
        %v651 = vpop.f32.mrb[0].mxu0
        %652 = vmatprep.mubr.f32.mxu0 0.0
        %653 = vmatmul.mubr.f32.gmra.mrb[0].mxu0 %v495
        %v654 = vpop.f32.mrb[0].mxu0
        %v655 = vadd.f32 %v541, %v654
        %v656 = vpop.f32.mrb[0].mxu0
        %657 = vmatprep.mubr.f32.mxu0 0.0
        %658 = vmatmul.mubr.f32.gmra.mrb[0].mxu0 %v496
        %v659 = vpop.f32.mrb[0].mxu0
        %v660 = vadd.f32 %v541, %v659
        %v661 = vpop.f32.mrb[0].mxu0
        %662 = vmatprep.mubr.f32.mxu0 0.0
        %663 = vmatmul.mubr.f32.gmra.mrb[0].mxu0 %v497
        %v664 = vpop.f32.mrb[0].mxu0
        %v665 = vadd.f32 %v541, %v664
        %v666 = vpop.f32.mrb[0].mxu0
        %667 = vmatprep.mubr.f32.mxu0 0.0
        %668 = vmatmul.mubr.f32.gmra.mrb[0].mxu0 %v498
        %v669 = vpop.f32.mrb[0].mxu0
        %v670 = vadd.f32 %v541, %v669
        %v671 = vpop.f32.mrb[0].mxu0
        %672 = vmatprep.mubr.f32.mxu0 0.0
        %673 = vmatmul.mubr.f32.gmra.mrb[0].mxu0 %v499
        %v674 = vpop.f32.mrb[0].mxu0
        %v675 = vadd.f32 %v541, %v674
        %v676 = vpop.f32.mrb[0].mxu0
        %677 = vmatprep.mubr.f32.mxu0 0.0
        %678 = vmatmul.mubr.f32.gmra.mrb[0].mxu0 %v500
        %v679 = vpop.f32.mrb[0].mxu0
        %v680 = vadd.f32 %v541, %v679
        %v681 = vpop.f32.mrb[0].mxu0
        %682 = vmatprep.mubr.f32.mxu0 0.0
        %683 = vmatmul.mubr.f32.gmra.mrb[0].mxu0 %v501
        %v684 = vpop.f32.mrb[0].mxu0
        %v685 = vadd.f32 %v541, %v684
        %v686 = vpop.f32.mrb[0].mxu0
        %687 = vmatprep.mubr.f32.mxu0 0.0
        %688 = vmatmul.mubr.f32.gmra.mrb[0].mxu0 %v502
        %v689 = vpop.f32.mrb[0].mxu0
        %v690 = vadd.f32 %v541, %v689
        %v691 = vpop.f32.mrb[0].mxu0
        %692 = vmatprep.mubr.f32.mxu0 0.0
        %693 = vmatmul.mubr.f32.gmra.mrb[0].mxu0 %v503
        %v694 = vpop.f32.mrb[0].mxu0
        %v695 = vadd.f32 %v541, %v694
        %v696 = vpop.f32.mrb[0].mxu0
        %697 = vmatprep.mubr.f32.mxu0 0.0
        %698 = vmatmul.mubr.f32.gmra.mrb[0].mxu0 %v504
        %v699 = vpop.f32.mrb[0].mxu0
        %v700 = vadd.f32 %v541, %v699
        %v701 = vpop.f32.mrb[0].mxu0
        %702 = vmatprep.mubr.f32.mxu0 0.0
        %703 = vmatmul.mubr.f32.gmra.mrb[0].mxu0 %v505
        %v704 = vpop.f32.mrb[0].mxu0
        %v705 = vadd.f32 %v541, %v704
        %v706 = vpop.f32.mrb[0].mxu0
        %707 = vmatprep.mubr.f32.mxu0 0.0
        %708 = vmatmul.mubr.f32.gmra.mrb[0].mxu0 %v506
        %v709 = vpop.f32.mrb[0].mxu0
        %v710 = vadd.f32 %v541, %v709
        %v711 = vpop.f32.mrb[0].mxu0
        %712 = vmatprep.mubr.f32.mxu0 0.0
        %713 = vmatmul.mubr.f32.gmra.mrb[0].mxu0 %v507
        %v714 = vpop.f32.mrb[0].mxu0
        %v715 = vadd.f32 %v541, %v714
        %v716 = vpop.f32.mrb[0].mxu0
        %717 = vmatprep.mubr.f32.mxu0 0.0
        %718 = vmatmul.mubr.f32.gmra.mrb[0].mxu0 %v508
        %v719 = vpop.f32.mrb[0].mxu0
        %v720 = vadd.f32 %v541, %v719
        %v721 = vpop.f32.mrb[0].mxu0
        %722 = vmatprep.mubr.f32.mxu0 0.0
        %723 = vmatmul.mubr.f32.gmra.mrb[0].mxu0 %v509
        %v724 = vpop.f32.mrb[0].mxu0
        %v725 = vadd.f32 %v541, %v724
        %v726 = vpop.f32.mrb[0].mxu0
        %727 = vmatprep.mubr.f32.mxu0 0.0
        %728 = vmatmul.mubr.f32.gmra.mrb[0].mxu0 %v510
        %v729 = vpop.f32.mrb[0].mxu0
        %v730 = vadd.f32 %v541, %v729
        %v731 = vpop.f32.mrb[0].mxu0
        %732 = vmatprep.mubr.f32.mxu0 0.0
        %733 = vmatmul.mubr.f32.gmra.mrb[0].mxu0 %v511
        %v734 = vpop.f32.mrb[0].mxu0
        %v735 = vadd.f32 %v541, %v734
        %v736 = vpop.f32.mrb[0].mxu0
        %737 = vmatprep.mubr.f32.mxu0 0.0
        %738 = vmatmul.mubr.f32.gmra.mrb[0].mxu0 %v512
        %v739 = vpop.f32.mrb[0].mxu0
        %v740 = vadd.f32 %v541, %v739
        %v741 = vpop.f32.mrb[0].mxu0
        %742 = vmatprep.mubr.f32.mxu0 0.0
        %743 = vmatmul.mubr.f32.gmra.mrb[0].mxu0 %v513
        %v744 = vpop.f32.mrb[0].mxu0
        %v745 = vadd.f32 %v541, %v744
        %v746 = vpop.f32.mrb[0].mxu0
        %747 = vmatprep.mubr.f32.mxu0 0.0
        %748 = vmatmul.mubr.f32.gmra.mrb[0].mxu0 %v514
        %v749 = vpop.f32.mrb[0].mxu0
        %v750 = vadd.f32 %v541, %v749
        %v751 = vpop.f32.mrb[0].mxu0
        %752 = vmatprep.mubr.f32.mxu0 0.0
        %753 = vmatmul.mubr.f32.gmra.mrb[0].mxu0 %v515
        %v754 = vpop.f32.mrb[0].mxu0
        %v755 = vadd.f32 %v541, %v754
        %v756 = vpop.f32.mrb[0].mxu0
        %757 = vmatprep.mubr.f32.mxu0 0.0
        %758 = vmatmul.mubr.f32.gmra.mrb[0].mxu0 %v516
        %v759 = vpop.f32.mrb[0].mxu0
        %v760 = vadd.f32 %v541, %v759
        %v761 = vpop.f32.mrb[0].mxu0
        %762 = vmatprep.mubr.f32.mxu0 0.0
        %763 = vmatmul.mubr.f32.gmra.mrb[0].mxu0 %v517
        %v764 = vpop.f32.mrb[0].mxu0
        %v765 = vadd.f32 %v541, %v764
        %v766 = vpop.f32.mrb[0].mxu0
        %767 = vdwg.mxu0
        %v768 = vtanh.pop %v610
        %v769 = vtanh.pop %v615
        %v770 = vtanh.pop %v620
        %v771 = vtanh.pop %v625
        %v772 = vtanh.pop %v630
        %v773 = vtanh.pop %v635
        %v774 = vtanh.pop %v640
        %v775 = vtanh.pop %v645
        %v776 = vtanh.pop %v650
        %v777 = vtanh.pop %v655
        %v778 = vtanh.pop %v660
        %v779 = vtanh.pop %v665
        %v780 = vtanh.pop %v670
        %v781 = vtanh.pop %v675
        %v782 = vtanh.pop %v680
        %v783 = vtanh.pop %v685
        %v784 = vtanh.pop %v690
        %v785 = vtanh.pop %v695
        %v786 = vtanh.pop %v700
        %v787 = vtanh.pop %v705
        %v788 = vtanh.pop %v710
        %v789 = vtanh.pop %v715
        %v790 = vtanh.pop %v720
        %v791 = vtanh.pop %v725
        %v792 = vtanh.pop %v730
        %v793 = vtanh.pop %v735
        %v794 = vtanh.pop %v740
        %v795 = vtanh.pop %v745
        %v796 = vtanh.pop %v750
        %v797 = vtanh.pop %v755
        %v798 = vtanh.pop %v760
        %v799 = vtanh.pop %v765
        %s800 = scalar_lea.vmem [#allocation5], 256
        %v801 = vld [vmem:[%s800] sm:$0xff]
        %v802 = vld [vmem:[%s800 + $0x8] sm:$0xff]
        %v803 = vld [vmem:[%s800 + $0x10] sm:$0xff]
        %v804 = vld [vmem:[%s800 + $0x18] sm:$0xff]
        %v805 = vld [vmem:[%s800 + $0x20] sm:$0xff]
        %v806 = vld [vmem:[%s800 + $0x28] sm:$0xff]
        %v807 = vld [vmem:[%s800 + $0x30] sm:$0xff]
        %v808 = vld [vmem:[%s800 + $0x38] sm:$0xff]
        %v809 = vld [vmem:[%s800 + $0x40] sm:$0xff]
        %v810 = vld [vmem:[%s800 + $0x48] sm:$0xff]
        %v811 = vld [vmem:[%s800 + $0x50] sm:$0xff]
        %v812 = vld [vmem:[%s800 + $0x58] sm:$0xff]
        %v813 = vld [vmem:[%s800 + $0x60] sm:$0xff]
        %v814 = vld [vmem:[%s800 + $0x68] sm:$0xff]
        %v815 = vld [vmem:[%s800 + $0x70] sm:$0xff]
        %v816 = vld [vmem:[%s800 + $0x78] sm:$0xff]
        %s817 = scalar_lea.vmem %s2, 2
        %v818 = vld [vmem:[%s817] sm:$0x1]
        %v820 = vlaneseq
        %v821 = vshrl.u32 %v820, 7
        %v822 = vsub.s32 0, %v821
        %v823 = vrot.slane %v818, %v822
        %825 = vmatprep.subr.mxu0 0.0
        %826 = vmatpush1.msra.mxu0 %v801
        %827 = vmatprep.subr.mxu0 0.0
        %828 = vmatpush1.msra.mxu0 %v802
        %829 = vmatprep.subr.mxu0 0.0
        %830 = vmatpush1.msra.mxu0 %v803
        %831 = vmatprep.subr.mxu0 0.0
        %832 = vmatpush1.msra.mxu0 %v804
        %833 = vmatprep.subr.mxu0 0.0
        %834 = vmatpush1.msra.mxu0 %v805
        %835 = vmatprep.subr.mxu0 0.0
        %836 = vmatpush1.msra.mxu0 %v806
        %837 = vmatprep.subr.mxu0 0.0
        %838 = vmatpush1.msra.mxu0 %v807
        %839 = vmatprep.subr.mxu0 0.0
        %840 = vmatpush1.msra.mxu0 %v808
        %841 = vmatprep.subr.mxu0 0.0
        %842 = vmatpush1.msra.mxu0 %v809
        %843 = vmatprep.subr.mxu0 0.0
        %844 = vmatpush1.msra.mxu0 %v810
        %845 = vmatprep.subr.mxu0 0.0
        %846 = vmatpush1.msra.mxu0 %v811
        %847 = vmatprep.subr.mxu0 0.0
        %848 = vmatpush1.msra.mxu0 %v812
        %849 = vmatprep.subr.mxu0 0.0
        %850 = vmatpush1.msra.mxu0 %v813
        %851 = vmatprep.subr.mxu0 0.0
        %852 = vmatpush1.msra.mxu0 %v814
        %853 = vmatprep.subr.mxu0 0.0
        %854 = vmatpush1.msra.mxu0 %v815
        %855 = vmatprep.subr.mxu0 0.0
        %856 = vmatpush1.msra.mxu0 %v816
        %857 = vmatprep.subr.mxu0 0.0
        %858 = vmatpush1.msra.mxu0 0.0
        %859 = vmatprep.subr.mxu0 0.0
        %860 = vmatpush1.msra.mxu0 0.0
        %861 = vmatprep.subr.mxu0 0.0
        %862 = vmatpush1.msra.mxu0 0.0
        %863 = vmatprep.subr.mxu0 0.0
        %864 = vmatpush1.msra.mxu0 0.0
        %865 = vmatprep.subr.mxu0 0.0
        %866 = vmatpush1.msra.mxu0 0.0
        %867 = vmatprep.subr.mxu0 0.0
        %868 = vmatpush1.msra.mxu0 0.0
        %869 = vmatprep.subr.mxu0 0.0
        %870 = vmatpush1.msra.mxu0 0.0
        %871 = vmatprep.subr.mxu0 0.0
        %872 = vmatpush1.msra.mxu0 0.0
        %873 = vmatprep.subr.mxu0 0.0
        %874 = vmatpush1.msra.mxu0 0.0
        %875 = vmatprep.subr.mxu0 0.0
        %876 = vmatpush1.msra.mxu0 0.0
        %877 = vmatprep.subr.mxu0 0.0
        %878 = vmatpush1.msra.mxu0 0.0
        %879 = vmatprep.subr.mxu0 0.0
        %880 = vmatpush1.msra.mxu0 0.0
        %881 = vmatprep.subr.mxu0 0.0
        %882 = vmatpush1.msra.mxu0 0.0
        %883 = vmatprep.subr.mxu0 0.0
        %884 = vmatpush1.msra.mxu0 0.0
        %885 = vmatprep.subr.mxu0 0.0
        %886 = vmatpush1.msra.mxu0 0.0
        %887 = vmatprep.subr.mxu0 0.0
        %888 = vmatpush1.msra.mxu0 0.0
        %889 = vmatprep.mubr.f32.mxu0 0.0
        %890 = vmatmul.mubr.f32.gmra.mrb[0].mxu0 %v768
        %v891 = vpop.f32.mrb[0].mxu0
        %v892 = vadd.f32 %v823, %v891
        %v893 = vpop.f32.mrb[0].mxu0
        %894 = vmatprep.mubr.f32.mxu0 0.0
        %895 = vmatmul.mubr.f32.gmra.mrb[0].mxu0 %v769
        %v896 = vpop.f32.mrb[0].mxu0
        %v897 = vadd.f32 %v823, %v896
        %v898 = vpop.f32.mrb[0].mxu0
        %899 = vmatprep.mubr.f32.mxu0 0.0
        %900 = vmatmul.mubr.f32.gmra.mrb[0].mxu0 %v770
        %v901 = vpop.f32.mrb[0].mxu0
        %v902 = vadd.f32 %v823, %v901
        %v903 = vpop.f32.mrb[0].mxu0
        %904 = vmatprep.mubr.f32.mxu0 0.0
        %905 = vmatmul.mubr.f32.gmra.mrb[0].mxu0 %v771
        %v906 = vpop.f32.mrb[0].mxu0
        %v907 = vadd.f32 %v823, %v906
        %v908 = vpop.f32.mrb[0].mxu0
        %909 = vmatprep.mubr.f32.mxu0 0.0
        %910 = vmatmul.mubr.f32.gmra.mrb[0].mxu0 %v772
        %v911 = vpop.f32.mrb[0].mxu0
        %v912 = vadd.f32 %v823, %v911
        %v913 = vpop.f32.mrb[0].mxu0
        %914 = vmatprep.mubr.f32.mxu0 0.0
        %915 = vmatmul.mubr.f32.gmra.mrb[0].mxu0 %v773
        %v916 = vpop.f32.mrb[0].mxu0
        %v917 = vadd.f32 %v823, %v916
        %v918 = vpop.f32.mrb[0].mxu0
        %919 = vmatprep.mubr.f32.mxu0 0.0
        %920 = vmatmul.mubr.f32.gmra.mrb[0].mxu0 %v774
        %v921 = vpop.f32.mrb[0].mxu0
        %v922 = vadd.f32 %v823, %v921
        %v923 = vpop.f32.mrb[0].mxu0
        %924 = vmatprep.mubr.f32.mxu0 0.0
        %925 = vmatmul.mubr.f32.gmra.mrb[0].mxu0 %v775
        %v926 = vpop.f32.mrb[0].mxu0
        %v927 = vadd.f32 %v823, %v926
        %v928 = vpop.f32.mrb[0].mxu0
        %929 = vmatprep.mubr.f32.mxu0 0.0
        %930 = vmatmul.mubr.f32.gmra.mrb[0].mxu0 %v776
        %v931 = vpop.f32.mrb[0].mxu0
        %v932 = vadd.f32 %v823, %v931
        %v933 = vpop.f32.mrb[0].mxu0
        %934 = vmatprep.mubr.f32.mxu0 0.0
        %935 = vmatmul.mubr.f32.gmra.mrb[0].mxu0 %v777
        %v936 = vpop.f32.mrb[0].mxu0
        %v937 = vadd.f32 %v823, %v936
        %v938 = vpop.f32.mrb[0].mxu0
        %939 = vmatprep.mubr.f32.mxu0 0.0
        %940 = vmatmul.mubr.f32.gmra.mrb[0].mxu0 %v778
        %v941 = vpop.f32.mrb[0].mxu0
        %v942 = vadd.f32 %v823, %v941
        %v943 = vpop.f32.mrb[0].mxu0
        %944 = vmatprep.mubr.f32.mxu0 0.0
        %945 = vmatmul.mubr.f32.gmra.mrb[0].mxu0 %v779
        %v946 = vpop.f32.mrb[0].mxu0
        %v947 = vadd.f32 %v823, %v946
        %v948 = vpop.f32.mrb[0].mxu0
        %949 = vmatprep.mubr.f32.mxu0 0.0
        %950 = vmatmul.mubr.f32.gmra.mrb[0].mxu0 %v780
        %v951 = vpop.f32.mrb[0].mxu0
        %v952 = vadd.f32 %v823, %v951
        %v953 = vpop.f32.mrb[0].mxu0
        %954 = vmatprep.mubr.f32.mxu0 0.0
        %955 = vmatmul.mubr.f32.gmra.mrb[0].mxu0 %v781
        %v956 = vpop.f32.mrb[0].mxu0
        %v957 = vadd.f32 %v823, %v956
        %v958 = vpop.f32.mrb[0].mxu0
        %959 = vmatprep.mubr.f32.mxu0 0.0
        %960 = vmatmul.mubr.f32.gmra.mrb[0].mxu0 %v782
        %v961 = vpop.f32.mrb[0].mxu0
        %v962 = vadd.f32 %v823, %v961
        %v963 = vpop.f32.mrb[0].mxu0
        %964 = vmatprep.mubr.f32.mxu0 0.0
        %965 = vmatmul.mubr.f32.gmra.mrb[0].mxu0 %v783
        %v966 = vpop.f32.mrb[0].mxu0
        %v967 = vadd.f32 %v823, %v966
        %v968 = vpop.f32.mrb[0].mxu0
        %969 = vmatprep.mubr.f32.mxu0 0.0
        %970 = vmatmul.mubr.f32.gmra.mrb[0].mxu0 %v784
        %v971 = vpop.f32.mrb[0].mxu0
        %v972 = vadd.f32 %v823, %v971
        %v973 = vpop.f32.mrb[0].mxu0
        %974 = vmatprep.mubr.f32.mxu0 0.0
        %975 = vmatmul.mubr.f32.gmra.mrb[0].mxu0 %v785
        %v976 = vpop.f32.mrb[0].mxu0
        %v977 = vadd.f32 %v823, %v976
        %v978 = vpop.f32.mrb[0].mxu0
        %979 = vmatprep.mubr.f32.mxu0 0.0
        %980 = vmatmul.mubr.f32.gmra.mrb[0].mxu0 %v786
        %v981 = vpop.f32.mrb[0].mxu0
        %v982 = vadd.f32 %v823, %v981
        %v983 = vpop.f32.mrb[0].mxu0
        %984 = vmatprep.mubr.f32.mxu0 0.0
        %985 = vmatmul.mubr.f32.gmra.mrb[0].mxu0 %v787
        %v986 = vpop.f32.mrb[0].mxu0
        %v987 = vadd.f32 %v823, %v986
        %v988 = vpop.f32.mrb[0].mxu0
        %989 = vmatprep.mubr.f32.mxu0 0.0
        %990 = vmatmul.mubr.f32.gmra.mrb[0].mxu0 %v788
        %v991 = vpop.f32.mrb[0].mxu0
        %v992 = vadd.f32 %v823, %v991
        %v993 = vpop.f32.mrb[0].mxu0
        %994 = vmatprep.mubr.f32.mxu0 0.0
        %995 = vmatmul.mubr.f32.gmra.mrb[0].mxu0 %v789
        %v996 = vpop.f32.mrb[0].mxu0
        %v997 = vadd.f32 %v823, %v996
        %v998 = vpop.f32.mrb[0].mxu0
        %999 = vmatprep.mubr.f32.mxu0 0.0
        %1000 = vmatmul.mubr.f32.gmra.mrb[0].mxu0 %v790
        %v1001 = vpop.f32.mrb[0].mxu0
        %v1002 = vadd.f32 %v823, %v1001
        %v1003 = vpop.f32.mrb[0].mxu0
        %1004 = vmatprep.mubr.f32.mxu0 0.0
        %1005 = vmatmul.mubr.f32.gmra.mrb[0].mxu0 %v791
        %v1006 = vpop.f32.mrb[0].mxu0
        %v1007 = vadd.f32 %v823, %v1006
        %v1008 = vpop.f32.mrb[0].mxu0
        %1009 = vmatprep.mubr.f32.mxu0 0.0
        %1010 = vmatmul.mubr.f32.gmra.mrb[0].mxu0 %v792
        %v1011 = vpop.f32.mrb[0].mxu0
        %v1012 = vadd.f32 %v823, %v1011
        %v1013 = vpop.f32.mrb[0].mxu0
        %1014 = vmatprep.mubr.f32.mxu0 0.0
        %1015 = vmatmul.mubr.f32.gmra.mrb[0].mxu0 %v793
        %v1016 = vpop.f32.mrb[0].mxu0
        %v1017 = vadd.f32 %v823, %v1016
        %v1018 = vpop.f32.mrb[0].mxu0
        %1019 = vmatprep.mubr.f32.mxu0 0.0
        %1020 = vmatmul.mubr.f32.gmra.mrb[0].mxu0 %v794
        %v1021 = vpop.f32.mrb[0].mxu0
        %v1022 = vadd.f32 %v823, %v1021
        %v1023 = vpop.f32.mrb[0].mxu0
        %1024 = vmatprep.mubr.f32.mxu0 0.0
        %1025 = vmatmul.mubr.f32.gmra.mrb[0].mxu0 %v795
        %v1026 = vpop.f32.mrb[0].mxu0
        %v1027 = vadd.f32 %v823, %v1026
        %v1028 = vpop.f32.mrb[0].mxu0
        %1029 = vmatprep.mubr.f32.mxu0 0.0
        %1030 = vmatmul.mubr.f32.gmra.mrb[0].mxu0 %v796
        %v1031 = vpop.f32.mrb[0].mxu0
        %v1032 = vadd.f32 %v823, %v1031
        %v1033 = vpop.f32.mrb[0].mxu0
        %1034 = vmatprep.mubr.f32.mxu0 0.0
        %1035 = vmatmul.mubr.f32.gmra.mrb[0].mxu0 %v797
        %v1036 = vpop.f32.mrb[0].mxu0
        %v1037 = vadd.f32 %v823, %v1036
        %v1038 = vpop.f32.mrb[0].mxu0
        %1039 = vmatprep.mubr.f32.mxu0 0.0
        %1040 = vmatmul.mubr.f32.gmra.mrb[0].mxu0 %v798
        %v1041 = vpop.f32.mrb[0].mxu0
        %v1042 = vadd.f32 %v823, %v1041
        %v1043 = vpop.f32.mrb[0].mxu0
        %1044 = vmatprep.mubr.f32.mxu0 0.0
        %1045 = vmatmul.mubr.f32.gmra.mrb[0].mxu0 %v799
        %v1046 = vpop.f32.mrb[0].mxu0
        %v1047 = vadd.f32 %v823, %v1046
        %v1048 = vpop.f32.mrb[0].mxu0
        %1049 = vdwg.mxu0
        %v1050 = vtanh.pop %v892
        %v1051 = vtanh.pop %v897
        %v1052 = vtanh.pop %v902
        %v1053 = vtanh.pop %v907
        %v1054 = vtanh.pop %v912
        %v1055 = vtanh.pop %v917
        %v1056 = vtanh.pop %v922
        %v1057 = vtanh.pop %v927
        %v1058 = vtanh.pop %v932
        %v1059 = vtanh.pop %v937
        %v1060 = vtanh.pop %v942
        %v1061 = vtanh.pop %v947
        %v1062 = vtanh.pop %v952
        %v1063 = vtanh.pop %v957
        %v1064 = vtanh.pop %v962
        %v1065 = vtanh.pop %v967
        %v1066 = vtanh.pop %v972
        %v1067 = vtanh.pop %v977
        %v1068 = vtanh.pop %v982
        %v1069 = vtanh.pop %v987
        %v1070 = vtanh.pop %v992
        %v1071 = vtanh.pop %v997
        %v1072 = vtanh.pop %v1002
        %v1073 = vtanh.pop %v1007
        %v1074 = vtanh.pop %v1012
        %v1075 = vtanh.pop %v1017
        %v1076 = vtanh.pop %v1022
        %v1077 = vtanh.pop %v1027
        %v1078 = vtanh.pop %v1032
        %v1079 = vtanh.pop %v1037
        %v1080 = vtanh.pop %v1042
        %v1081 = vtanh.pop %v1047
        %s1082 = scalar_lea.vmem [#allocation5], 384
        %v1083 = vld [vmem:[%s1082] sm:$0xff]
        %v1084 = vld [vmem:[%s1082 + $0x8] sm:$0xff]
        %v1085 = vld [vmem:[%s1082 + $0x10] sm:$0xff]
        %v1086 = vld [vmem:[%s1082 + $0x18] sm:$0xff]
        %v1087 = vld [vmem:[%s1082 + $0x20] sm:$0xff]
        %v1088 = vld [vmem:[%s1082 + $0x28] sm:$0xff]
        %v1089 = vld [vmem:[%s1082 + $0x30] sm:$0xff]
        %v1090 = vld [vmem:[%s1082 + $0x38] sm:$0xff]
        %v1091 = vld [vmem:[%s1082 + $0x40] sm:$0xff]
        %v1092 = vld [vmem:[%s1082 + $0x48] sm:$0xff]
        %v1093 = vld [vmem:[%s1082 + $0x50] sm:$0xff]
        %v1094 = vld [vmem:[%s1082 + $0x58] sm:$0xff]
        %v1095 = vld [vmem:[%s1082 + $0x60] sm:$0xff]
        %v1096 = vld [vmem:[%s1082 + $0x68] sm:$0xff]
        %v1097 = vld [vmem:[%s1082 + $0x70] sm:$0xff]
        %v1098 = vld [vmem:[%s1082 + $0x78] sm:$0xff]
        %s1099 = scalar_lea.vmem %s2, 3
        %v1100 = vld [vmem:[%s1099] sm:$0x1]
        %v1102 = vlaneseq
        %v1103 = vshrl.u32 %v1102, 7
        %v1104 = vsub.s32 0, %v1103
        %v1105 = vrot.slane %v1100, %v1104
        %1107 = vmatprep.subr.mxu0 0.0
        %1108 = vmatpush1.msra.mxu0 %v1083
        %1109 = vmatprep.subr.mxu0 0.0
        %1110 = vmatpush1.msra.mxu0 %v1084
        %1111 = vmatprep.subr.mxu0 0.0
        %1112 = vmatpush1.msra.mxu0 %v1085
        %1113 = vmatprep.subr.mxu0 0.0
        %1114 = vmatpush1.msra.mxu0 %v1086
        %1115 = vmatprep.subr.mxu0 0.0
        %1116 = vmatpush1.msra.mxu0 %v1087
        %1117 = vmatprep.subr.mxu0 0.0
        %1118 = vmatpush1.msra.mxu0 %v1088
        %1119 = vmatprep.subr.mxu0 0.0
        %1120 = vmatpush1.msra.mxu0 %v1089
        %1121 = vmatprep.subr.mxu0 0.0
        %1122 = vmatpush1.msra.mxu0 %v1090
        %1123 = vmatprep.subr.mxu0 0.0
        %1124 = vmatpush1.msra.mxu0 %v1091
        %1125 = vmatprep.subr.mxu0 0.0
        %1126 = vmatpush1.msra.mxu0 %v1092
        %1127 = vmatprep.subr.mxu0 0.0
        %1128 = vmatpush1.msra.mxu0 %v1093
        %1129 = vmatprep.subr.mxu0 0.0
        %1130 = vmatpush1.msra.mxu0 %v1094
        %1131 = vmatprep.subr.mxu0 0.0
        %1132 = vmatpush1.msra.mxu0 %v1095
        %1133 = vmatprep.subr.mxu0 0.0
        %1134 = vmatpush1.msra.mxu0 %v1096
        %1135 = vmatprep.subr.mxu0 0.0
        %1136 = vmatpush1.msra.mxu0 %v1097
        %1137 = vmatprep.subr.mxu0 0.0
        %1138 = vmatpush1.msra.mxu0 %v1098
        %1139 = vmatprep.subr.mxu0 0.0
        %1140 = vmatpush1.msra.mxu0 0.0
        %1141 = vmatprep.subr.mxu0 0.0
        %1142 = vmatpush1.msra.mxu0 0.0
        %1143 = vmatprep.subr.mxu0 0.0
        %1144 = vmatpush1.msra.mxu0 0.0
        %1145 = vmatprep.subr.mxu0 0.0
        %1146 = vmatpush1.msra.mxu0 0.0
        %1147 = vmatprep.subr.mxu0 0.0
        %1148 = vmatpush1.msra.mxu0 0.0
        %1149 = vmatprep.subr.mxu0 0.0
        %1150 = vmatpush1.msra.mxu0 0.0
        %1151 = vmatprep.subr.mxu0 0.0
        %1152 = vmatpush1.msra.mxu0 0.0
        %1153 = vmatprep.subr.mxu0 0.0
        %1154 = vmatpush1.msra.mxu0 0.0
        %1155 = vmatprep.subr.mxu0 0.0
        %1156 = vmatpush1.msra.mxu0 0.0
        %1157 = vmatprep.subr.mxu0 0.0
        %1158 = vmatpush1.msra.mxu0 0.0
        %1159 = vmatprep.subr.mxu0 0.0
        %1160 = vmatpush1.msra.mxu0 0.0
        %1161 = vmatprep.subr.mxu0 0.0
        %1162 = vmatpush1.msra.mxu0 0.0
        %1163 = vmatprep.subr.mxu0 0.0
        %1164 = vmatpush1.msra.mxu0 0.0
        %1165 = vmatprep.subr.mxu0 0.0
        %1166 = vmatpush1.msra.mxu0 0.0
        %1167 = vmatprep.subr.mxu0 0.0
        %1168 = vmatpush1.msra.mxu0 0.0
        %1169 = vmatprep.subr.mxu0 0.0
        %1170 = vmatpush1.msra.mxu0 0.0
        %1171 = vmatprep.mubr.f32.mxu0 0.0
        %1172 = vmatmul.mubr.f32.gmra.mrb[0].mxu0 %v1050
        %v1173 = vpop.f32.mrb[0].mxu0
        %v1174 = vadd.f32 %v1105, %v1173
        %v1175 = vpop.f32.mrb[0].mxu0
        %1176 = vmatprep.mubr.f32.mxu0 0.0
        %1177 = vmatmul.mubr.f32.gmra.mrb[0].mxu0 %v1051
        %v1178 = vpop.f32.mrb[0].mxu0
        %v1179 = vadd.f32 %v1105, %v1178
        %v1180 = vpop.f32.mrb[0].mxu0
        %1181 = vmatprep.mubr.f32.mxu0 0.0
        %1182 = vmatmul.mubr.f32.gmra.mrb[0].mxu0 %v1052
        %v1183 = vpop.f32.mrb[0].mxu0
        %v1184 = vadd.f32 %v1105, %v1183
        %v1185 = vpop.f32.mrb[0].mxu0
        %1186 = vmatprep.mubr.f32.mxu0 0.0
        %1187 = vmatmul.mubr.f32.gmra.mrb[0].mxu0 %v1053
        %v1188 = vpop.f32.mrb[0].mxu0
        %v1189 = vadd.f32 %v1105, %v1188
        %v1190 = vpop.f32.mrb[0].mxu0
        %1191 = vmatprep.mubr.f32.mxu0 0.0
        %1192 = vmatmul.mubr.f32.gmra.mrb[0].mxu0 %v1054
        %v1193 = vpop.f32.mrb[0].mxu0
        %v1194 = vadd.f32 %v1105, %v1193
        %v1195 = vpop.f32.mrb[0].mxu0
        %1196 = vmatprep.mubr.f32.mxu0 0.0
        %1197 = vmatmul.mubr.f32.gmra.mrb[0].mxu0 %v1055
        %v1198 = vpop.f32.mrb[0].mxu0
        %v1199 = vadd.f32 %v1105, %v1198
        %v1200 = vpop.f32.mrb[0].mxu0
        %1201 = vmatprep.mubr.f32.mxu0 0.0
        %1202 = vmatmul.mubr.f32.gmra.mrb[0].mxu0 %v1056
        %v1203 = vpop.f32.mrb[0].mxu0
        %v1204 = vadd.f32 %v1105, %v1203
        %v1205 = vpop.f32.mrb[0].mxu0
        %1206 = vmatprep.mubr.f32.mxu0 0.0
        %1207 = vmatmul.mubr.f32.gmra.mrb[0].mxu0 %v1057
        %v1208 = vpop.f32.mrb[0].mxu0
        %v1209 = vadd.f32 %v1105, %v1208
        %v1210 = vpop.f32.mrb[0].mxu0
        %1211 = vmatprep.mubr.f32.mxu0 0.0
        %1212 = vmatmul.mubr.f32.gmra.mrb[0].mxu0 %v1058
        %v1213 = vpop.f32.mrb[0].mxu0
        %v1214 = vadd.f32 %v1105, %v1213
        %v1215 = vpop.f32.mrb[0].mxu0
        %1216 = vmatprep.mubr.f32.mxu0 0.0
        %1217 = vmatmul.mubr.f32.gmra.mrb[0].mxu0 %v1059
        %v1218 = vpop.f32.mrb[0].mxu0
        %v1219 = vadd.f32 %v1105, %v1218
        %v1220 = vpop.f32.mrb[0].mxu0
        %1221 = vmatprep.mubr.f32.mxu0 0.0
        %1222 = vmatmul.mubr.f32.gmra.mrb[0].mxu0 %v1060
        %v1223 = vpop.f32.mrb[0].mxu0
        %v1224 = vadd.f32 %v1105, %v1223
        %v1225 = vpop.f32.mrb[0].mxu0
        %1226 = vmatprep.mubr.f32.mxu0 0.0
        %1227 = vmatmul.mubr.f32.gmra.mrb[0].mxu0 %v1061
        %v1228 = vpop.f32.mrb[0].mxu0
        %v1229 = vadd.f32 %v1105, %v1228
        %v1230 = vpop.f32.mrb[0].mxu0
        %1231 = vmatprep.mubr.f32.mxu0 0.0
        %1232 = vmatmul.mubr.f32.gmra.mrb[0].mxu0 %v1062
        %v1233 = vpop.f32.mrb[0].mxu0
        %v1234 = vadd.f32 %v1105, %v1233
        %v1235 = vpop.f32.mrb[0].mxu0
        %1236 = vmatprep.mubr.f32.mxu0 0.0
        %1237 = vmatmul.mubr.f32.gmra.mrb[0].mxu0 %v1063
        %v1238 = vpop.f32.mrb[0].mxu0
        %v1239 = vadd.f32 %v1105, %v1238
        %v1240 = vpop.f32.mrb[0].mxu0
        %1241 = vmatprep.mubr.f32.mxu0 0.0
        %1242 = vmatmul.mubr.f32.gmra.mrb[0].mxu0 %v1064
        %v1243 = vpop.f32.mrb[0].mxu0
        %v1244 = vadd.f32 %v1105, %v1243
        %v1245 = vpop.f32.mrb[0].mxu0
        %1246 = vmatprep.mubr.f32.mxu0 0.0
        %1247 = vmatmul.mubr.f32.gmra.mrb[0].mxu0 %v1065
        %v1248 = vpop.f32.mrb[0].mxu0
        %v1249 = vadd.f32 %v1105, %v1248
        %v1250 = vpop.f32.mrb[0].mxu0
        %1251 = vmatprep.mubr.f32.mxu0 0.0
        %1252 = vmatmul.mubr.f32.gmra.mrb[0].mxu0 %v1066
        %v1253 = vpop.f32.mrb[0].mxu0
        %v1254 = vadd.f32 %v1105, %v1253
        %v1255 = vpop.f32.mrb[0].mxu0
        %1256 = vmatprep.mubr.f32.mxu0 0.0
        %1257 = vmatmul.mubr.f32.gmra.mrb[0].mxu0 %v1067
        %v1258 = vpop.f32.mrb[0].mxu0
        %v1259 = vadd.f32 %v1105, %v1258
        %v1260 = vpop.f32.mrb[0].mxu0
        %1261 = vmatprep.mubr.f32.mxu0 0.0
        %1262 = vmatmul.mubr.f32.gmra.mrb[0].mxu0 %v1068
        %v1263 = vpop.f32.mrb[0].mxu0
        %v1264 = vadd.f32 %v1105, %v1263
        %v1265 = vpop.f32.mrb[0].mxu0
        %1266 = vmatprep.mubr.f32.mxu0 0.0
        %1267 = vmatmul.mubr.f32.gmra.mrb[0].mxu0 %v1069
        %v1268 = vpop.f32.mrb[0].mxu0
        %v1269 = vadd.f32 %v1105, %v1268
        %v1270 = vpop.f32.mrb[0].mxu0
        %1271 = vmatprep.mubr.f32.mxu0 0.0
        %1272 = vmatmul.mubr.f32.gmra.mrb[0].mxu0 %v1070
        %v1273 = vpop.f32.mrb[0].mxu0
        %v1274 = vadd.f32 %v1105, %v1273
        %v1275 = vpop.f32.mrb[0].mxu0
        %1276 = vmatprep.mubr.f32.mxu0 0.0
        %1277 = vmatmul.mubr.f32.gmra.mrb[0].mxu0 %v1071
        %v1278 = vpop.f32.mrb[0].mxu0
        %v1279 = vadd.f32 %v1105, %v1278
        %v1280 = vpop.f32.mrb[0].mxu0
        %1281 = vmatprep.mubr.f32.mxu0 0.0
        %1282 = vmatmul.mubr.f32.gmra.mrb[0].mxu0 %v1072
        %v1283 = vpop.f32.mrb[0].mxu0
        %v1284 = vadd.f32 %v1105, %v1283
        %v1285 = vpop.f32.mrb[0].mxu0
        %1286 = vmatprep.mubr.f32.mxu0 0.0
        %1287 = vmatmul.mubr.f32.gmra.mrb[0].mxu0 %v1073
        %v1288 = vpop.f32.mrb[0].mxu0
        %v1289 = vadd.f32 %v1105, %v1288
        %v1290 = vpop.f32.mrb[0].mxu0
        %1291 = vmatprep.mubr.f32.mxu0 0.0
        %1292 = vmatmul.mubr.f32.gmra.mrb[0].mxu0 %v1074
        %v1293 = vpop.f32.mrb[0].mxu0
        %v1294 = vadd.f32 %v1105, %v1293
        %v1295 = vpop.f32.mrb[0].mxu0
        %1296 = vmatprep.mubr.f32.mxu0 0.0
        %1297 = vmatmul.mubr.f32.gmra.mrb[0].mxu0 %v1075
        %v1298 = vpop.f32.mrb[0].mxu0
        %v1299 = vadd.f32 %v1105, %v1298
        %v1300 = vpop.f32.mrb[0].mxu0
        %1301 = vmatprep.mubr.f32.mxu0 0.0
        %1302 = vmatmul.mubr.f32.gmra.mrb[0].mxu0 %v1076
        %v1303 = vpop.f32.mrb[0].mxu0
        %v1304 = vadd.f32 %v1105, %v1303
        %v1305 = vpop.f32.mrb[0].mxu0
        %1306 = vmatprep.mubr.f32.mxu0 0.0
        %1307 = vmatmul.mubr.f32.gmra.mrb[0].mxu0 %v1077
        %v1308 = vpop.f32.mrb[0].mxu0
        %v1309 = vadd.f32 %v1105, %v1308
        %v1310 = vpop.f32.mrb[0].mxu0
        %1311 = vmatprep.mubr.f32.mxu0 0.0
        %1312 = vmatmul.mubr.f32.gmra.mrb[0].mxu0 %v1078
        %v1313 = vpop.f32.mrb[0].mxu0
        %v1314 = vadd.f32 %v1105, %v1313
        %v1315 = vpop.f32.mrb[0].mxu0
        %1316 = vmatprep.mubr.f32.mxu0 0.0
        %1317 = vmatmul.mubr.f32.gmra.mrb[0].mxu0 %v1079
        %v1318 = vpop.f32.mrb[0].mxu0
        %v1319 = vadd.f32 %v1105, %v1318
        %v1320 = vpop.f32.mrb[0].mxu0
        %1321 = vmatprep.mubr.f32.mxu0 0.0
        %1322 = vmatmul.mubr.f32.gmra.mrb[0].mxu0 %v1080
        %v1323 = vpop.f32.mrb[0].mxu0
        %v1324 = vadd.f32 %v1105, %v1323
        %v1325 = vpop.f32.mrb[0].mxu0
        %1326 = vmatprep.mubr.f32.mxu0 0.0
        %1327 = vmatmul.mubr.f32.gmra.mrb[0].mxu0 %v1081
        %v1328 = vpop.f32.mrb[0].mxu0
        %v1329 = vadd.f32 %v1105, %v1328
        %v1330 = vpop.f32.mrb[0].mxu0
        %1331 = vdwg.mxu0
        %v1332 = vtanh.pop %v1174
        %v1333 = vtanh.pop %v1179
        %v1334 = vtanh.pop %v1184
        %v1335 = vtanh.pop %v1189
        %v1336 = vtanh.pop %v1194
        %v1337 = vtanh.pop %v1199
        %v1338 = vtanh.pop %v1204
        %v1339 = vtanh.pop %v1209
        %v1340 = vtanh.pop %v1214
        %v1341 = vtanh.pop %v1219
        %v1342 = vtanh.pop %v1224
        %v1343 = vtanh.pop %v1229
        %v1344 = vtanh.pop %v1234
        %v1345 = vtanh.pop %v1239
        %v1346 = vtanh.pop %v1244
        %v1347 = vtanh.pop %v1249
        %v1348 = vtanh.pop %v1254
        %v1349 = vtanh.pop %v1259
        %v1350 = vtanh.pop %v1264
        %v1351 = vtanh.pop %v1269
        %v1352 = vtanh.pop %v1274
        %v1353 = vtanh.pop %v1279
        %v1354 = vtanh.pop %v1284
        %v1355 = vtanh.pop %v1289
        %v1356 = vtanh.pop %v1294
        %v1357 = vtanh.pop %v1299
        %v1358 = vtanh.pop %v1304
        %v1359 = vtanh.pop %v1309
        %v1360 = vtanh.pop %v1314
        %v1361 = vtanh.pop %v1319
        %v1362 = vtanh.pop %v1324
        %v1363 = vtanh.pop %v1329
        %s1364 = scalar_lea.vmem [#allocation5], 512
        %v1365 = vld [vmem:[%s1364] sm:$0xff]
        %v1366 = vld [vmem:[%s1364 + $0x8] sm:$0xff]
        %v1367 = vld [vmem:[%s1364 + $0x10] sm:$0xff]
        %v1368 = vld [vmem:[%s1364 + $0x18] sm:$0xff]
        %v1369 = vld [vmem:[%s1364 + $0x20] sm:$0xff]
        %v1370 = vld [vmem:[%s1364 + $0x28] sm:$0xff]
        %v1371 = vld [vmem:[%s1364 + $0x30] sm:$0xff]
        %v1372 = vld [vmem:[%s1364 + $0x38] sm:$0xff]
        %v1373 = vld [vmem:[%s1364 + $0x40] sm:$0xff]
        %v1374 = vld [vmem:[%s1364 + $0x48] sm:$0xff]
        %v1375 = vld [vmem:[%s1364 + $0x50] sm:$0xff]
        %v1376 = vld [vmem:[%s1364 + $0x58] sm:$0xff]
        %v1377 = vld [vmem:[%s1364 + $0x60] sm:$0xff]
        %v1378 = vld [vmem:[%s1364 + $0x68] sm:$0xff]
        %v1379 = vld [vmem:[%s1364 + $0x70] sm:$0xff]
        %v1380 = vld [vmem:[%s1364 + $0x78] sm:$0xff]
        %s1381 = scalar_lea.vmem %s2, 4
        %v1382 = vld [vmem:[%s1381] sm:$0x1]
        %v1384 = vlaneseq
        %v1385 = vshrl.u32 %v1384, 7
        %v1386 = vsub.s32 0, %v1385
        %v1387 = vrot.slane %v1382, %v1386
        %1389 = vmatprep.subr.mxu0 0.0
        %1390 = vmatpush1.msra.mxu0 %v1365
        %1391 = vmatprep.subr.mxu0 0.0
        %1392 = vmatpush1.msra.mxu0 %v1366
        %1393 = vmatprep.subr.mxu0 0.0
        %1394 = vmatpush1.msra.mxu0 %v1367
        %1395 = vmatprep.subr.mxu0 0.0
        %1396 = vmatpush1.msra.mxu0 %v1368
        %1397 = vmatprep.subr.mxu0 0.0
        %1398 = vmatpush1.msra.mxu0 %v1369
        %1399 = vmatprep.subr.mxu0 0.0
        %1400 = vmatpush1.msra.mxu0 %v1370
        %1401 = vmatprep.subr.mxu0 0.0
        %1402 = vmatpush1.msra.mxu0 %v1371
        %1403 = vmatprep.subr.mxu0 0.0
        %1404 = vmatpush1.msra.mxu0 %v1372
        %1405 = vmatprep.subr.mxu0 0.0
        %1406 = vmatpush1.msra.mxu0 %v1373
        %1407 = vmatprep.subr.mxu0 0.0
        %1408 = vmatpush1.msra.mxu0 %v1374
        %1409 = vmatprep.subr.mxu0 0.0
        %1410 = vmatpush1.msra.mxu0 %v1375
        %1411 = vmatprep.subr.mxu0 0.0
        %1412 = vmatpush1.msra.mxu0 %v1376
        %1413 = vmatprep.subr.mxu0 0.0
        %1414 = vmatpush1.msra.mxu0 %v1377
        %1415 = vmatprep.subr.mxu0 0.0
        %1416 = vmatpush1.msra.mxu0 %v1378
        %1417 = vmatprep.subr.mxu0 0.0
        %1418 = vmatpush1.msra.mxu0 %v1379
        %1419 = vmatprep.subr.mxu0 0.0
        %1420 = vmatpush1.msra.mxu0 %v1380
        %1421 = vmatprep.subr.mxu0 0.0
        %1422 = vmatpush1.msra.mxu0 0.0
        %1423 = vmatprep.subr.mxu0 0.0
        %1424 = vmatpush1.msra.mxu0 0.0
        %1425 = vmatprep.subr.mxu0 0.0
        %1426 = vmatpush1.msra.mxu0 0.0
        %1427 = vmatprep.subr.mxu0 0.0
        %1428 = vmatpush1.msra.mxu0 0.0
        %1429 = vmatprep.subr.mxu0 0.0
        %1430 = vmatpush1.msra.mxu0 0.0
        %1431 = vmatprep.subr.mxu0 0.0
        %1432 = vmatpush1.msra.mxu0 0.0
        %1433 = vmatprep.subr.mxu0 0.0
        %1434 = vmatpush1.msra.mxu0 0.0
        %1435 = vmatprep.subr.mxu0 0.0
        %1436 = vmatpush1.msra.mxu0 0.0
        %1437 = vmatprep.subr.mxu0 0.0
        %1438 = vmatpush1.msra.mxu0 0.0
        %1439 = vmatprep.subr.mxu0 0.0
        %1440 = vmatpush1.msra.mxu0 0.0
        %1441 = vmatprep.subr.mxu0 0.0
        %1442 = vmatpush1.msra.mxu0 0.0
        %1443 = vmatprep.subr.mxu0 0.0
        %1444 = vmatpush1.msra.mxu0 0.0
        %1445 = vmatprep.subr.mxu0 0.0
        %1446 = vmatpush1.msra.mxu0 0.0
        %1447 = vmatprep.subr.mxu0 0.0
        %1448 = vmatpush1.msra.mxu0 0.0
        %1449 = vmatprep.subr.mxu0 0.0
        %1450 = vmatpush1.msra.mxu0 0.0
        %1451 = vmatprep.subr.mxu0 0.0
        %1452 = vmatpush1.msra.mxu0 0.0
        %1453 = vmatprep.mubr.f32.mxu0 0.0
        %1454 = vmatmul.mubr.f32.gmra.mrb[0].mxu0 %v1332
        %v1455 = vpop.f32.mrb[0].mxu0
        %v1456 = vadd.f32 %v1387, %v1455
        %v1457 = vpop.f32.mrb[0].mxu0
        %1458 = vmatprep.mubr.f32.mxu0 0.0
        %1459 = vmatmul.mubr.f32.gmra.mrb[0].mxu0 %v1333
        %v1460 = vpop.f32.mrb[0].mxu0
        %v1461 = vadd.f32 %v1387, %v1460
        %v1462 = vpop.f32.mrb[0].mxu0
        %1463 = vmatprep.mubr.f32.mxu0 0.0
        %1464 = vmatmul.mubr.f32.gmra.mrb[0].mxu0 %v1334
        %v1465 = vpop.f32.mrb[0].mxu0
        %v1466 = vadd.f32 %v1387, %v1465
        %v1467 = vpop.f32.mrb[0].mxu0
        %1468 = vmatprep.mubr.f32.mxu0 0.0
        %1469 = vmatmul.mubr.f32.gmra.mrb[0].mxu0 %v1335
        %v1470 = vpop.f32.mrb[0].mxu0
        %v1471 = vadd.f32 %v1387, %v1470
        %v1472 = vpop.f32.mrb[0].mxu0
        %1473 = vmatprep.mubr.f32.mxu0 0.0
        %1474 = vmatmul.mubr.f32.gmra.mrb[0].mxu0 %v1336
        %v1475 = vpop.f32.mrb[0].mxu0
        %v1476 = vadd.f32 %v1387, %v1475
        %v1477 = vpop.f32.mrb[0].mxu0
        %1478 = vmatprep.mubr.f32.mxu0 0.0
        %1479 = vmatmul.mubr.f32.gmra.mrb[0].mxu0 %v1337
        %v1480 = vpop.f32.mrb[0].mxu0
        %v1481 = vadd.f32 %v1387, %v1480
        %v1482 = vpop.f32.mrb[0].mxu0
        %1483 = vmatprep.mubr.f32.mxu0 0.0
        %1484 = vmatmul.mubr.f32.gmra.mrb[0].mxu0 %v1338
        %v1485 = vpop.f32.mrb[0].mxu0
        %v1486 = vadd.f32 %v1387, %v1485
        %v1487 = vpop.f32.mrb[0].mxu0
        %1488 = vmatprep.mubr.f32.mxu0 0.0
        %1489 = vmatmul.mubr.f32.gmra.mrb[0].mxu0 %v1339
        %v1490 = vpop.f32.mrb[0].mxu0
        %v1491 = vadd.f32 %v1387, %v1490
        %v1492 = vpop.f32.mrb[0].mxu0
        %1493 = vmatprep.mubr.f32.mxu0 0.0
        %1494 = vmatmul.mubr.f32.gmra.mrb[0].mxu0 %v1340
        %v1495 = vpop.f32.mrb[0].mxu0
        %v1496 = vadd.f32 %v1387, %v1495
        %v1497 = vpop.f32.mrb[0].mxu0
        %1498 = vmatprep.mubr.f32.mxu0 0.0
        %1499 = vmatmul.mubr.f32.gmra.mrb[0].mxu0 %v1341
        %v1500 = vpop.f32.mrb[0].mxu0
        %v1501 = vadd.f32 %v1387, %v1500
        %v1502 = vpop.f32.mrb[0].mxu0
        %1503 = vmatprep.mubr.f32.mxu0 0.0
        %1504 = vmatmul.mubr.f32.gmra.mrb[0].mxu0 %v1342
        %v1505 = vpop.f32.mrb[0].mxu0
        %v1506 = vadd.f32 %v1387, %v1505
        %v1507 = vpop.f32.mrb[0].mxu0
        %1508 = vmatprep.mubr.f32.mxu0 0.0
        %1509 = vmatmul.mubr.f32.gmra.mrb[0].mxu0 %v1343
        %v1510 = vpop.f32.mrb[0].mxu0
        %v1511 = vadd.f32 %v1387, %v1510
        %v1512 = vpop.f32.mrb[0].mxu0
        %1513 = vmatprep.mubr.f32.mxu0 0.0
        %1514 = vmatmul.mubr.f32.gmra.mrb[0].mxu0 %v1344
        %v1515 = vpop.f32.mrb[0].mxu0
        %v1516 = vadd.f32 %v1387, %v1515
        %v1517 = vpop.f32.mrb[0].mxu0
        %1518 = vmatprep.mubr.f32.mxu0 0.0
        %1519 = vmatmul.mubr.f32.gmra.mrb[0].mxu0 %v1345
        %v1520 = vpop.f32.mrb[0].mxu0
        %v1521 = vadd.f32 %v1387, %v1520
        %v1522 = vpop.f32.mrb[0].mxu0
        %1523 = vmatprep.mubr.f32.mxu0 0.0
        %1524 = vmatmul.mubr.f32.gmra.mrb[0].mxu0 %v1346
        %v1525 = vpop.f32.mrb[0].mxu0
        %v1526 = vadd.f32 %v1387, %v1525
        %v1527 = vpop.f32.mrb[0].mxu0
        %1528 = vmatprep.mubr.f32.mxu0 0.0
        %1529 = vmatmul.mubr.f32.gmra.mrb[0].mxu0 %v1347
        %v1530 = vpop.f32.mrb[0].mxu0
        %v1531 = vadd.f32 %v1387, %v1530
        %v1532 = vpop.f32.mrb[0].mxu0
        %1533 = vmatprep.mubr.f32.mxu0 0.0
        %1534 = vmatmul.mubr.f32.gmra.mrb[0].mxu0 %v1348
        %v1535 = vpop.f32.mrb[0].mxu0
        %v1536 = vadd.f32 %v1387, %v1535
        %v1537 = vpop.f32.mrb[0].mxu0
        %1538 = vmatprep.mubr.f32.mxu0 0.0
        %1539 = vmatmul.mubr.f32.gmra.mrb[0].mxu0 %v1349
        %v1540 = vpop.f32.mrb[0].mxu0
        %v1541 = vadd.f32 %v1387, %v1540
        %v1542 = vpop.f32.mrb[0].mxu0
        %1543 = vmatprep.mubr.f32.mxu0 0.0
        %1544 = vmatmul.mubr.f32.gmra.mrb[0].mxu0 %v1350
        %v1545 = vpop.f32.mrb[0].mxu0
        %v1546 = vadd.f32 %v1387, %v1545
        %v1547 = vpop.f32.mrb[0].mxu0
        %1548 = vmatprep.mubr.f32.mxu0 0.0
        %1549 = vmatmul.mubr.f32.gmra.mrb[0].mxu0 %v1351
        %v1550 = vpop.f32.mrb[0].mxu0
        %v1551 = vadd.f32 %v1387, %v1550
        %v1552 = vpop.f32.mrb[0].mxu0
        %1553 = vmatprep.mubr.f32.mxu0 0.0
        %1554 = vmatmul.mubr.f32.gmra.mrb[0].mxu0 %v1352
        %v1555 = vpop.f32.mrb[0].mxu0
        %v1556 = vadd.f32 %v1387, %v1555
        %v1557 = vpop.f32.mrb[0].mxu0
        %1558 = vmatprep.mubr.f32.mxu0 0.0
        %1559 = vmatmul.mubr.f32.gmra.mrb[0].mxu0 %v1353
        %v1560 = vpop.f32.mrb[0].mxu0
        %v1561 = vadd.f32 %v1387, %v1560
        %v1562 = vpop.f32.mrb[0].mxu0
        %1563 = vmatprep.mubr.f32.mxu0 0.0
        %1564 = vmatmul.mubr.f32.gmra.mrb[0].mxu0 %v1354
        %v1565 = vpop.f32.mrb[0].mxu0
        %v1566 = vadd.f32 %v1387, %v1565
        %v1567 = vpop.f32.mrb[0].mxu0
        %1568 = vmatprep.mubr.f32.mxu0 0.0
        %1569 = vmatmul.mubr.f32.gmra.mrb[0].mxu0 %v1355
        %v1570 = vpop.f32.mrb[0].mxu0
        %v1571 = vadd.f32 %v1387, %v1570
        %v1572 = vpop.f32.mrb[0].mxu0
        %1573 = vmatprep.mubr.f32.mxu0 0.0
        %1574 = vmatmul.mubr.f32.gmra.mrb[0].mxu0 %v1356
        %v1575 = vpop.f32.mrb[0].mxu0
        %v1576 = vadd.f32 %v1387, %v1575
        %v1577 = vpop.f32.mrb[0].mxu0
        %1578 = vmatprep.mubr.f32.mxu0 0.0
        %1579 = vmatmul.mubr.f32.gmra.mrb[0].mxu0 %v1357
        %v1580 = vpop.f32.mrb[0].mxu0
        %v1581 = vadd.f32 %v1387, %v1580
        %v1582 = vpop.f32.mrb[0].mxu0
        %1583 = vmatprep.mubr.f32.mxu0 0.0
        %1584 = vmatmul.mubr.f32.gmra.mrb[0].mxu0 %v1358
        %v1585 = vpop.f32.mrb[0].mxu0
        %v1586 = vadd.f32 %v1387, %v1585
        %v1587 = vpop.f32.mrb[0].mxu0
        %1588 = vmatprep.mubr.f32.mxu0 0.0
        %1589 = vmatmul.mubr.f32.gmra.mrb[0].mxu0 %v1359
        %v1590 = vpop.f32.mrb[0].mxu0
        %v1591 = vadd.f32 %v1387, %v1590
        %v1592 = vpop.f32.mrb[0].mxu0
        %1593 = vmatprep.mubr.f32.mxu0 0.0
        %1594 = vmatmul.mubr.f32.gmra.mrb[0].mxu0 %v1360
        %v1595 = vpop.f32.mrb[0].mxu0
        %v1596 = vadd.f32 %v1387, %v1595
        %v1597 = vpop.f32.mrb[0].mxu0
        %1598 = vmatprep.mubr.f32.mxu0 0.0
        %1599 = vmatmul.mubr.f32.gmra.mrb[0].mxu0 %v1361
        %v1600 = vpop.f32.mrb[0].mxu0
        %v1601 = vadd.f32 %v1387, %v1600
        %v1602 = vpop.f32.mrb[0].mxu0
        %1603 = vmatprep.mubr.f32.mxu0 0.0
        %1604 = vmatmul.mubr.f32.gmra.mrb[0].mxu0 %v1362
        %v1605 = vpop.f32.mrb[0].mxu0
        %v1606 = vadd.f32 %v1387, %v1605
        %v1607 = vpop.f32.mrb[0].mxu0
        %1608 = vmatprep.mubr.f32.mxu0 0.0
        %1609 = vmatmul.mubr.f32.gmra.mrb[0].mxu0 %v1363
        %v1610 = vpop.f32.mrb[0].mxu0
        %v1611 = vadd.f32 %v1387, %v1610
        %v1612 = vpop.f32.mrb[0].mxu0
        %1613 = vdwg.mxu0
        %v1614 = vtanh.pop %v1456
        %v1615 = vtanh.pop %v1461
        %v1616 = vtanh.pop %v1466
        %v1617 = vtanh.pop %v1471
        %v1618 = vtanh.pop %v1476
        %v1619 = vtanh.pop %v1481
        %v1620 = vtanh.pop %v1486
        %v1621 = vtanh.pop %v1491
        %v1622 = vtanh.pop %v1496
        %v1623 = vtanh.pop %v1501
        %v1624 = vtanh.pop %v1506
        %v1625 = vtanh.pop %v1511
        %v1626 = vtanh.pop %v1516
        %v1627 = vtanh.pop %v1521
        %v1628 = vtanh.pop %v1526
        %v1629 = vtanh.pop %v1531
        %v1630 = vtanh.pop %v1536
        %v1631 = vtanh.pop %v1541
        %v1632 = vtanh.pop %v1546
        %v1633 = vtanh.pop %v1551
        %v1634 = vtanh.pop %v1556
        %v1635 = vtanh.pop %v1561
        %v1636 = vtanh.pop %v1566
        %v1637 = vtanh.pop %v1571
        %v1638 = vtanh.pop %v1576
        %v1639 = vtanh.pop %v1581
        %v1640 = vtanh.pop %v1586
        %v1641 = vtanh.pop %v1591
        %v1642 = vtanh.pop %v1596
        %v1643 = vtanh.pop %v1601
        %v1644 = vtanh.pop %v1606
        %v1645 = vtanh.pop %v1611
        %s1646 = scalar_lea.vmem [#allocation5], 640
        %v1647 = vld [vmem:[%s1646] sm:$0xff]
        %v1648 = vld [vmem:[%s1646 + $0x8] sm:$0xff]
        %v1649 = vld [vmem:[%s1646 + $0x10] sm:$0xff]
        %v1650 = vld [vmem:[%s1646 + $0x18] sm:$0xff]
        %v1651 = vld [vmem:[%s1646 + $0x20] sm:$0xff]
        %v1652 = vld [vmem:[%s1646 + $0x28] sm:$0xff]
        %v1653 = vld [vmem:[%s1646 + $0x30] sm:$0xff]
        %v1654 = vld [vmem:[%s1646 + $0x38] sm:$0xff]
        %v1655 = vld [vmem:[%s1646 + $0x40] sm:$0xff]
        %v1656 = vld [vmem:[%s1646 + $0x48] sm:$0xff]
        %v1657 = vld [vmem:[%s1646 + $0x50] sm:$0xff]
        %v1658 = vld [vmem:[%s1646 + $0x58] sm:$0xff]
        %v1659 = vld [vmem:[%s1646 + $0x60] sm:$0xff]
        %v1660 = vld [vmem:[%s1646 + $0x68] sm:$0xff]
        %v1661 = vld [vmem:[%s1646 + $0x70] sm:$0xff]
        %v1662 = vld [vmem:[%s1646 + $0x78] sm:$0xff]
        %s1663 = scalar_lea.vmem %s2, 5
        %v1664 = vld [vmem:[%s1663] sm:$0x1]
        %v1666 = vlaneseq
        %v1667 = vshrl.u32 %v1666, 7
        %v1668 = vsub.s32 0, %v1667
        %v1669 = vrot.slane %v1664, %v1668
        %1671 = vmatprep.subr.mxu0 0.0
        %1672 = vmatpush1.msra.mxu0 %v1647
        %1673 = vmatprep.subr.mxu0 0.0
        %1674 = vmatpush1.msra.mxu0 %v1648
        %1675 = vmatprep.subr.mxu0 0.0
        %1676 = vmatpush1.msra.mxu0 %v1649
        %1677 = vmatprep.subr.mxu0 0.0
        %1678 = vmatpush1.msra.mxu0 %v1650
        %1679 = vmatprep.subr.mxu0 0.0
        %1680 = vmatpush1.msra.mxu0 %v1651
        %1681 = vmatprep.subr.mxu0 0.0
        %1682 = vmatpush1.msra.mxu0 %v1652
        %1683 = vmatprep.subr.mxu0 0.0
        %1684 = vmatpush1.msra.mxu0 %v1653
        %1685 = vmatprep.subr.mxu0 0.0
        %1686 = vmatpush1.msra.mxu0 %v1654
        %1687 = vmatprep.subr.mxu0 0.0
        %1688 = vmatpush1.msra.mxu0 %v1655
        %1689 = vmatprep.subr.mxu0 0.0
        %1690 = vmatpush1.msra.mxu0 %v1656
        %1691 = vmatprep.subr.mxu0 0.0
        %1692 = vmatpush1.msra.mxu0 %v1657
        %1693 = vmatprep.subr.mxu0 0.0
        %1694 = vmatpush1.msra.mxu0 %v1658
        %1695 = vmatprep.subr.mxu0 0.0
        %1696 = vmatpush1.msra.mxu0 %v1659
        %1697 = vmatprep.subr.mxu0 0.0
        %1698 = vmatpush1.msra.mxu0 %v1660
        %1699 = vmatprep.subr.mxu0 0.0
        %1700 = vmatpush1.msra.mxu0 %v1661
        %1701 = vmatprep.subr.mxu0 0.0
        %1702 = vmatpush1.msra.mxu0 %v1662
        %1703 = vmatprep.subr.mxu0 0.0
        %1704 = vmatpush1.msra.mxu0 0.0
        %1705 = vmatprep.subr.mxu0 0.0
        %1706 = vmatpush1.msra.mxu0 0.0
        %1707 = vmatprep.subr.mxu0 0.0
        %1708 = vmatpush1.msra.mxu0 0.0
        %1709 = vmatprep.subr.mxu0 0.0
        %1710 = vmatpush1.msra.mxu0 0.0
        %1711 = vmatprep.subr.mxu0 0.0
        %1712 = vmatpush1.msra.mxu0 0.0
        %1713 = vmatprep.subr.mxu0 0.0
        %1714 = vmatpush1.msra.mxu0 0.0
        %1715 = vmatprep.subr.mxu0 0.0
        %1716 = vmatpush1.msra.mxu0 0.0
        %1717 = vmatprep.subr.mxu0 0.0
        %1718 = vmatpush1.msra.mxu0 0.0
        %1719 = vmatprep.subr.mxu0 0.0
        %1720 = vmatpush1.msra.mxu0 0.0
        %1721 = vmatprep.subr.mxu0 0.0
        %1722 = vmatpush1.msra.mxu0 0.0
        %1723 = vmatprep.subr.mxu0 0.0
        %1724 = vmatpush1.msra.mxu0 0.0
        %1725 = vmatprep.subr.mxu0 0.0
        %1726 = vmatpush1.msra.mxu0 0.0
        %1727 = vmatprep.subr.mxu0 0.0
        %1728 = vmatpush1.msra.mxu0 0.0
        %1729 = vmatprep.subr.mxu0 0.0
        %1730 = vmatpush1.msra.mxu0 0.0
        %1731 = vmatprep.subr.mxu0 0.0
        %1732 = vmatpush1.msra.mxu0 0.0
        %1733 = vmatprep.subr.mxu0 0.0
        %1734 = vmatpush1.msra.mxu0 0.0
        %1735 = vmatprep.mubr.f32.mxu0 0.0
        %1736 = vmatmul.mubr.f32.gmra.mrb[0].mxu0 %v1614
        %v1737 = vpop.f32.mrb[0].mxu0
        %v1738 = vadd.f32 %v1669, %v1737
        %v1739 = vpop.f32.mrb[0].mxu0
        %1740 = vmatprep.mubr.f32.mxu0 0.0
        %1741 = vmatmul.mubr.f32.gmra.mrb[0].mxu0 %v1615
        %v1742 = vpop.f32.mrb[0].mxu0
        %v1743 = vadd.f32 %v1669, %v1742
        %v1744 = vpop.f32.mrb[0].mxu0
        %1745 = vmatprep.mubr.f32.mxu0 0.0
        %1746 = vmatmul.mubr.f32.gmra.mrb[0].mxu0 %v1616
        %v1747 = vpop.f32.mrb[0].mxu0
        %v1748 = vadd.f32 %v1669, %v1747
        %v1749 = vpop.f32.mrb[0].mxu0
        %1750 = vmatprep.mubr.f32.mxu0 0.0
        %1751 = vmatmul.mubr.f32.gmra.mrb[0].mxu0 %v1617
        %v1752 = vpop.f32.mrb[0].mxu0
        %v1753 = vadd.f32 %v1669, %v1752
        %v1754 = vpop.f32.mrb[0].mxu0
        %1755 = vmatprep.mubr.f32.mxu0 0.0
        %1756 = vmatmul.mubr.f32.gmra.mrb[0].mxu0 %v1618
        %v1757 = vpop.f32.mrb[0].mxu0
        %v1758 = vadd.f32 %v1669, %v1757
        %v1759 = vpop.f32.mrb[0].mxu0
        %1760 = vmatprep.mubr.f32.mxu0 0.0
        %1761 = vmatmul.mubr.f32.gmra.mrb[0].mxu0 %v1619
        %v1762 = vpop.f32.mrb[0].mxu0
        %v1763 = vadd.f32 %v1669, %v1762
        %v1764 = vpop.f32.mrb[0].mxu0
        %1765 = vmatprep.mubr.f32.mxu0 0.0
        %1766 = vmatmul.mubr.f32.gmra.mrb[0].mxu0 %v1620
        %v1767 = vpop.f32.mrb[0].mxu0
        %v1768 = vadd.f32 %v1669, %v1767
        %v1769 = vpop.f32.mrb[0].mxu0
        %1770 = vmatprep.mubr.f32.mxu0 0.0
        %1771 = vmatmul.mubr.f32.gmra.mrb[0].mxu0 %v1621
        %v1772 = vpop.f32.mrb[0].mxu0
        %v1773 = vadd.f32 %v1669, %v1772
        %v1774 = vpop.f32.mrb[0].mxu0
        %1775 = vmatprep.mubr.f32.mxu0 0.0
        %1776 = vmatmul.mubr.f32.gmra.mrb[0].mxu0 %v1622
        %v1777 = vpop.f32.mrb[0].mxu0
        %v1778 = vadd.f32 %v1669, %v1777
        %v1779 = vpop.f32.mrb[0].mxu0
        %1780 = vmatprep.mubr.f32.mxu0 0.0
        %1781 = vmatmul.mubr.f32.gmra.mrb[0].mxu0 %v1623
        %v1782 = vpop.f32.mrb[0].mxu0
        %v1783 = vadd.f32 %v1669, %v1782
        %v1784 = vpop.f32.mrb[0].mxu0
        %1785 = vmatprep.mubr.f32.mxu0 0.0
        %1786 = vmatmul.mubr.f32.gmra.mrb[0].mxu0 %v1624
        %v1787 = vpop.f32.mrb[0].mxu0
        %v1788 = vadd.f32 %v1669, %v1787
        %v1789 = vpop.f32.mrb[0].mxu0
        %1790 = vmatprep.mubr.f32.mxu0 0.0
        %1791 = vmatmul.mubr.f32.gmra.mrb[0].mxu0 %v1625
        %v1792 = vpop.f32.mrb[0].mxu0
        %v1793 = vadd.f32 %v1669, %v1792
        %v1794 = vpop.f32.mrb[0].mxu0
        %1795 = vmatprep.mubr.f32.mxu0 0.0
        %1796 = vmatmul.mubr.f32.gmra.mrb[0].mxu0 %v1626
        %v1797 = vpop.f32.mrb[0].mxu0
        %v1798 = vadd.f32 %v1669, %v1797
        %v1799 = vpop.f32.mrb[0].mxu0
        %1800 = vmatprep.mubr.f32.mxu0 0.0
        %1801 = vmatmul.mubr.f32.gmra.mrb[0].mxu0 %v1627
        %v1802 = vpop.f32.mrb[0].mxu0
        %v1803 = vadd.f32 %v1669, %v1802
        %v1804 = vpop.f32.mrb[0].mxu0
        %1805 = vmatprep.mubr.f32.mxu0 0.0
        %1806 = vmatmul.mubr.f32.gmra.mrb[0].mxu0 %v1628
        %v1807 = vpop.f32.mrb[0].mxu0
        %v1808 = vadd.f32 %v1669, %v1807
        %v1809 = vpop.f32.mrb[0].mxu0
        %1810 = vmatprep.mubr.f32.mxu0 0.0
        %1811 = vmatmul.mubr.f32.gmra.mrb[0].mxu0 %v1629
        %v1812 = vpop.f32.mrb[0].mxu0
        %v1813 = vadd.f32 %v1669, %v1812
        %v1814 = vpop.f32.mrb[0].mxu0
        %1815 = vmatprep.mubr.f32.mxu0 0.0
        %1816 = vmatmul.mubr.f32.gmra.mrb[0].mxu0 %v1630
        %v1817 = vpop.f32.mrb[0].mxu0
        %v1818 = vadd.f32 %v1669, %v1817
        %v1819 = vpop.f32.mrb[0].mxu0
        %1820 = vmatprep.mubr.f32.mxu0 0.0
        %1821 = vmatmul.mubr.f32.gmra.mrb[0].mxu0 %v1631
        %v1822 = vpop.f32.mrb[0].mxu0
        %v1823 = vadd.f32 %v1669, %v1822
        %v1824 = vpop.f32.mrb[0].mxu0
        %1825 = vmatprep.mubr.f32.mxu0 0.0
        %1826 = vmatmul.mubr.f32.gmra.mrb[0].mxu0 %v1632
        %v1827 = vpop.f32.mrb[0].mxu0
        %v1828 = vadd.f32 %v1669, %v1827
        %v1829 = vpop.f32.mrb[0].mxu0
        %1830 = vmatprep.mubr.f32.mxu0 0.0
        %1831 = vmatmul.mubr.f32.gmra.mrb[0].mxu0 %v1633
        %v1832 = vpop.f32.mrb[0].mxu0
        %v1833 = vadd.f32 %v1669, %v1832
        %v1834 = vpop.f32.mrb[0].mxu0
        %1835 = vmatprep.mubr.f32.mxu0 0.0
        %1836 = vmatmul.mubr.f32.gmra.mrb[0].mxu0 %v1634
        %v1837 = vpop.f32.mrb[0].mxu0
        %v1838 = vadd.f32 %v1669, %v1837
        %v1839 = vpop.f32.mrb[0].mxu0
        %1840 = vmatprep.mubr.f32.mxu0 0.0
        %1841 = vmatmul.mubr.f32.gmra.mrb[0].mxu0 %v1635
        %v1842 = vpop.f32.mrb[0].mxu0
        %v1843 = vadd.f32 %v1669, %v1842
        %v1844 = vpop.f32.mrb[0].mxu0
        %1845 = vmatprep.mubr.f32.mxu0 0.0
        %1846 = vmatmul.mubr.f32.gmra.mrb[0].mxu0 %v1636
        %v1847 = vpop.f32.mrb[0].mxu0
        %v1848 = vadd.f32 %v1669, %v1847
        %v1849 = vpop.f32.mrb[0].mxu0
        %1850 = vmatprep.mubr.f32.mxu0 0.0
        %1851 = vmatmul.mubr.f32.gmra.mrb[0].mxu0 %v1637
        %v1852 = vpop.f32.mrb[0].mxu0
        %v1853 = vadd.f32 %v1669, %v1852
        %v1854 = vpop.f32.mrb[0].mxu0
        %1855 = vmatprep.mubr.f32.mxu0 0.0
        %1856 = vmatmul.mubr.f32.gmra.mrb[0].mxu0 %v1638
        %v1857 = vpop.f32.mrb[0].mxu0
        %v1858 = vadd.f32 %v1669, %v1857
        %v1859 = vpop.f32.mrb[0].mxu0
        %1860 = vmatprep.mubr.f32.mxu0 0.0
        %1861 = vmatmul.mubr.f32.gmra.mrb[0].mxu0 %v1639
        %v1862 = vpop.f32.mrb[0].mxu0
        %v1863 = vadd.f32 %v1669, %v1862
        %v1864 = vpop.f32.mrb[0].mxu0
        %1865 = vmatprep.mubr.f32.mxu0 0.0
        %1866 = vmatmul.mubr.f32.gmra.mrb[0].mxu0 %v1640
        %v1867 = vpop.f32.mrb[0].mxu0
        %v1868 = vadd.f32 %v1669, %v1867
        %v1869 = vpop.f32.mrb[0].mxu0
        %1870 = vmatprep.mubr.f32.mxu0 0.0
        %1871 = vmatmul.mubr.f32.gmra.mrb[0].mxu0 %v1641
        %v1872 = vpop.f32.mrb[0].mxu0
        %v1873 = vadd.f32 %v1669, %v1872
        %v1874 = vpop.f32.mrb[0].mxu0
        %1875 = vmatprep.mubr.f32.mxu0 0.0
        %1876 = vmatmul.mubr.f32.gmra.mrb[0].mxu0 %v1642
        %v1877 = vpop.f32.mrb[0].mxu0
        %v1878 = vadd.f32 %v1669, %v1877
        %v1879 = vpop.f32.mrb[0].mxu0
        %1880 = vmatprep.mubr.f32.mxu0 0.0
        %1881 = vmatmul.mubr.f32.gmra.mrb[0].mxu0 %v1643
        %v1882 = vpop.f32.mrb[0].mxu0
        %v1883 = vadd.f32 %v1669, %v1882
        %v1884 = vpop.f32.mrb[0].mxu0
        %1885 = vmatprep.mubr.f32.mxu0 0.0
        %1886 = vmatmul.mubr.f32.gmra.mrb[0].mxu0 %v1644
        %v1887 = vpop.f32.mrb[0].mxu0
        %v1888 = vadd.f32 %v1669, %v1887
        %v1889 = vpop.f32.mrb[0].mxu0
        %1890 = vmatprep.mubr.f32.mxu0 0.0
        %1891 = vmatmul.mubr.f32.gmra.mrb[0].mxu0 %v1645
        %v1892 = vpop.f32.mrb[0].mxu0
        %v1893 = vadd.f32 %v1669, %v1892
        %v1894 = vpop.f32.mrb[0].mxu0
        %1895 = vdwg.mxu0
        %v1896 = vtanh.pop %v1738
        %v1897 = vtanh.pop %v1743
        %v1898 = vtanh.pop %v1748
        %v1899 = vtanh.pop %v1753
        %v1900 = vtanh.pop %v1758
        %v1901 = vtanh.pop %v1763
        %v1902 = vtanh.pop %v1768
        %v1903 = vtanh.pop %v1773
        %v1904 = vtanh.pop %v1778
        %v1905 = vtanh.pop %v1783
        %v1906 = vtanh.pop %v1788
        %v1907 = vtanh.pop %v1793
        %v1908 = vtanh.pop %v1798
        %v1909 = vtanh.pop %v1803
        %v1910 = vtanh.pop %v1808
        %v1911 = vtanh.pop %v1813
        %v1912 = vtanh.pop %v1818
        %v1913 = vtanh.pop %v1823
        %v1914 = vtanh.pop %v1828
        %v1915 = vtanh.pop %v1833
        %v1916 = vtanh.pop %v1838
        %v1917 = vtanh.pop %v1843
        %v1918 = vtanh.pop %v1848
        %v1919 = vtanh.pop %v1853
        %v1920 = vtanh.pop %v1858
        %v1921 = vtanh.pop %v1863
        %v1922 = vtanh.pop %v1868
        %v1923 = vtanh.pop %v1873
        %v1924 = vtanh.pop %v1878
        %v1925 = vtanh.pop %v1883
        %v1926 = vtanh.pop %v1888
        %v1927 = vtanh.pop %v1893
        %s1928 = scalar_lea.vmem [#allocation5], 768
        %v1929 = vld [vmem:[%s1928] sm:$0xff]
        %v1930 = vld [vmem:[%s1928 + $0x8] sm:$0xff]
        %v1931 = vld [vmem:[%s1928 + $0x10] sm:$0xff]
        %v1932 = vld [vmem:[%s1928 + $0x18] sm:$0xff]
        %v1933 = vld [vmem:[%s1928 + $0x20] sm:$0xff]
        %v1934 = vld [vmem:[%s1928 + $0x28] sm:$0xff]
        %v1935 = vld [vmem:[%s1928 + $0x30] sm:$0xff]
        %v1936 = vld [vmem:[%s1928 + $0x38] sm:$0xff]
        %v1937 = vld [vmem:[%s1928 + $0x40] sm:$0xff]
        %v1938 = vld [vmem:[%s1928 + $0x48] sm:$0xff]
        %v1939 = vld [vmem:[%s1928 + $0x50] sm:$0xff]
        %v1940 = vld [vmem:[%s1928 + $0x58] sm:$0xff]
        %v1941 = vld [vmem:[%s1928 + $0x60] sm:$0xff]
        %v1942 = vld [vmem:[%s1928 + $0x68] sm:$0xff]
        %v1943 = vld [vmem:[%s1928 + $0x70] sm:$0xff]
        %v1944 = vld [vmem:[%s1928 + $0x78] sm:$0xff]
        %s1945 = scalar_lea.vmem %s2, 6
        %v1946 = vld [vmem:[%s1945] sm:$0x1]
        %v1948 = vlaneseq
        %v1949 = vshrl.u32 %v1948, 7
        %v1950 = vsub.s32 0, %v1949
        %v1951 = vrot.slane %v1946, %v1950
        %1953 = vmatprep.subr.mxu0 0.0
        %1954 = vmatpush1.msra.mxu0 %v1929
        %1955 = vmatprep.subr.mxu0 0.0
        %1956 = vmatpush1.msra.mxu0 %v1930
        %1957 = vmatprep.subr.mxu0 0.0
        %1958 = vmatpush1.msra.mxu0 %v1931
        %1959 = vmatprep.subr.mxu0 0.0
        %1960 = vmatpush1.msra.mxu0 %v1932
        %1961 = vmatprep.subr.mxu0 0.0
        %1962 = vmatpush1.msra.mxu0 %v1933
        %1963 = vmatprep.subr.mxu0 0.0
        %1964 = vmatpush1.msra.mxu0 %v1934
        %1965 = vmatprep.subr.mxu0 0.0
        %1966 = vmatpush1.msra.mxu0 %v1935
        %1967 = vmatprep.subr.mxu0 0.0
        %1968 = vmatpush1.msra.mxu0 %v1936
        %1969 = vmatprep.subr.mxu0 0.0
        %1970 = vmatpush1.msra.mxu0 %v1937
        %1971 = vmatprep.subr.mxu0 0.0
        %1972 = vmatpush1.msra.mxu0 %v1938
        %1973 = vmatprep.subr.mxu0 0.0
        %1974 = vmatpush1.msra.mxu0 %v1939
        %1975 = vmatprep.subr.mxu0 0.0
        %1976 = vmatpush1.msra.mxu0 %v1940
        %1977 = vmatprep.subr.mxu0 0.0
        %1978 = vmatpush1.msra.mxu0 %v1941
        %1979 = vmatprep.subr.mxu0 0.0
        %1980 = vmatpush1.msra.mxu0 %v1942
        %1981 = vmatprep.subr.mxu0 0.0
        %1982 = vmatpush1.msra.mxu0 %v1943
        %1983 = vmatprep.subr.mxu0 0.0
        %1984 = vmatpush1.msra.mxu0 %v1944
        %1985 = vmatprep.subr.mxu0 0.0
        %1986 = vmatpush1.msra.mxu0 0.0
        %1987 = vmatprep.subr.mxu0 0.0
        %1988 = vmatpush1.msra.mxu0 0.0
        %1989 = vmatprep.subr.mxu0 0.0
        %1990 = vmatpush1.msra.mxu0 0.0
        %1991 = vmatprep.subr.mxu0 0.0
        %1992 = vmatpush1.msra.mxu0 0.0
        %1993 = vmatprep.subr.mxu0 0.0
        %1994 = vmatpush1.msra.mxu0 0.0
        %1995 = vmatprep.subr.mxu0 0.0
        %1996 = vmatpush1.msra.mxu0 0.0
        %1997 = vmatprep.subr.mxu0 0.0
        %1998 = vmatpush1.msra.mxu0 0.0
        %1999 = vmatprep.subr.mxu0 0.0
        %2000 = vmatpush1.msra.mxu0 0.0
        %2001 = vmatprep.subr.mxu0 0.0
        %2002 = vmatpush1.msra.mxu0 0.0
        %2003 = vmatprep.subr.mxu0 0.0
        %2004 = vmatpush1.msra.mxu0 0.0
        %2005 = vmatprep.subr.mxu0 0.0
        %2006 = vmatpush1.msra.mxu0 0.0
        %2007 = vmatprep.subr.mxu0 0.0
        %2008 = vmatpush1.msra.mxu0 0.0
        %2009 = vmatprep.subr.mxu0 0.0
        %2010 = vmatpush1.msra.mxu0 0.0
        %2011 = vmatprep.subr.mxu0 0.0
        %2012 = vmatpush1.msra.mxu0 0.0
        %2013 = vmatprep.subr.mxu0 0.0
        %2014 = vmatpush1.msra.mxu0 0.0
        %2015 = vmatprep.subr.mxu0 0.0
        %2016 = vmatpush1.msra.mxu0 0.0
        %2017 = vmatprep.mubr.f32.mxu0 0.0
        %2018 = vmatmul.mubr.f32.gmra.mrb[0].mxu0 %v1896
        %v2019 = vpop.f32.mrb[0].mxu0
        %v2020 = vadd.f32 %v1951, %v2019
        %v2021 = vpop.f32.mrb[0].mxu0
        %2022 = vmatprep.mubr.f32.mxu0 0.0
        %2023 = vmatmul.mubr.f32.gmra.mrb[0].mxu0 %v1897
        %v2024 = vpop.f32.mrb[0].mxu0
        %v2025 = vadd.f32 %v1951, %v2024
        %v2026 = vpop.f32.mrb[0].mxu0
        %2027 = vmatprep.mubr.f32.mxu0 0.0
        %2028 = vmatmul.mubr.f32.gmra.mrb[0].mxu0 %v1898
        %v2029 = vpop.f32.mrb[0].mxu0
        %v2030 = vadd.f32 %v1951, %v2029
        %v2031 = vpop.f32.mrb[0].mxu0
        %2032 = vmatprep.mubr.f32.mxu0 0.0
        %2033 = vmatmul.mubr.f32.gmra.mrb[0].mxu0 %v1899
        %v2034 = vpop.f32.mrb[0].mxu0
        %v2035 = vadd.f32 %v1951, %v2034
        %v2036 = vpop.f32.mrb[0].mxu0
        %2037 = vmatprep.mubr.f32.mxu0 0.0
        %2038 = vmatmul.mubr.f32.gmra.mrb[0].mxu0 %v1900
        %v2039 = vpop.f32.mrb[0].mxu0
        %v2040 = vadd.f32 %v1951, %v2039
        %v2041 = vpop.f32.mrb[0].mxu0
        %2042 = vmatprep.mubr.f32.mxu0 0.0
        %2043 = vmatmul.mubr.f32.gmra.mrb[0].mxu0 %v1901
        %v2044 = vpop.f32.mrb[0].mxu0
        %v2045 = vadd.f32 %v1951, %v2044
        %v2046 = vpop.f32.mrb[0].mxu0
        %2047 = vmatprep.mubr.f32.mxu0 0.0
        %2048 = vmatmul.mubr.f32.gmra.mrb[0].mxu0 %v1902
        %v2049 = vpop.f32.mrb[0].mxu0
        %v2050 = vadd.f32 %v1951, %v2049
        %v2051 = vpop.f32.mrb[0].mxu0
        %2052 = vmatprep.mubr.f32.mxu0 0.0
        %2053 = vmatmul.mubr.f32.gmra.mrb[0].mxu0 %v1903
        %v2054 = vpop.f32.mrb[0].mxu0
        %v2055 = vadd.f32 %v1951, %v2054
        %v2056 = vpop.f32.mrb[0].mxu0
        %2057 = vmatprep.mubr.f32.mxu0 0.0
        %2058 = vmatmul.mubr.f32.gmra.mrb[0].mxu0 %v1904
        %v2059 = vpop.f32.mrb[0].mxu0
        %v2060 = vadd.f32 %v1951, %v2059
        %v2061 = vpop.f32.mrb[0].mxu0
        %2062 = vmatprep.mubr.f32.mxu0 0.0
        %2063 = vmatmul.mubr.f32.gmra.mrb[0].mxu0 %v1905
        %v2064 = vpop.f32.mrb[0].mxu0
        %v2065 = vadd.f32 %v1951, %v2064
        %v2066 = vpop.f32.mrb[0].mxu0
        %2067 = vmatprep.mubr.f32.mxu0 0.0
        %2068 = vmatmul.mubr.f32.gmra.mrb[0].mxu0 %v1906
        %v2069 = vpop.f32.mrb[0].mxu0
        %v2070 = vadd.f32 %v1951, %v2069
        %v2071 = vpop.f32.mrb[0].mxu0
        %2072 = vmatprep.mubr.f32.mxu0 0.0
        %2073 = vmatmul.mubr.f32.gmra.mrb[0].mxu0 %v1907
        %v2074 = vpop.f32.mrb[0].mxu0
        %v2075 = vadd.f32 %v1951, %v2074
        %v2076 = vpop.f32.mrb[0].mxu0
        %2077 = vmatprep.mubr.f32.mxu0 0.0
        %2078 = vmatmul.mubr.f32.gmra.mrb[0].mxu0 %v1908
        %v2079 = vpop.f32.mrb[0].mxu0
        %v2080 = vadd.f32 %v1951, %v2079
        %v2081 = vpop.f32.mrb[0].mxu0
        %2082 = vmatprep.mubr.f32.mxu0 0.0
        %2083 = vmatmul.mubr.f32.gmra.mrb[0].mxu0 %v1909
        %v2084 = vpop.f32.mrb[0].mxu0
        %v2085 = vadd.f32 %v1951, %v2084
        %v2086 = vpop.f32.mrb[0].mxu0
        %2087 = vmatprep.mubr.f32.mxu0 0.0
        %2088 = vmatmul.mubr.f32.gmra.mrb[0].mxu0 %v1910
        %v2089 = vpop.f32.mrb[0].mxu0
        %v2090 = vadd.f32 %v1951, %v2089
        %v2091 = vpop.f32.mrb[0].mxu0
        %2092 = vmatprep.mubr.f32.mxu0 0.0
        %2093 = vmatmul.mubr.f32.gmra.mrb[0].mxu0 %v1911
        %v2094 = vpop.f32.mrb[0].mxu0
        %v2095 = vadd.f32 %v1951, %v2094
        %v2096 = vpop.f32.mrb[0].mxu0
        %2097 = vmatprep.mubr.f32.mxu0 0.0
        %2098 = vmatmul.mubr.f32.gmra.mrb[0].mxu0 %v1912
        %v2099 = vpop.f32.mrb[0].mxu0
        %v2100 = vadd.f32 %v1951, %v2099
        %v2101 = vpop.f32.mrb[0].mxu0
        %2102 = vmatprep.mubr.f32.mxu0 0.0
        %2103 = vmatmul.mubr.f32.gmra.mrb[0].mxu0 %v1913
        %v2104 = vpop.f32.mrb[0].mxu0
        %v2105 = vadd.f32 %v1951, %v2104
        %v2106 = vpop.f32.mrb[0].mxu0
        %2107 = vmatprep.mubr.f32.mxu0 0.0
        %2108 = vmatmul.mubr.f32.gmra.mrb[0].mxu0 %v1914
        %v2109 = vpop.f32.mrb[0].mxu0
        %v2110 = vadd.f32 %v1951, %v2109
        %v2111 = vpop.f32.mrb[0].mxu0
        %2112 = vmatprep.mubr.f32.mxu0 0.0
        %2113 = vmatmul.mubr.f32.gmra.mrb[0].mxu0 %v1915
        %v2114 = vpop.f32.mrb[0].mxu0
        %v2115 = vadd.f32 %v1951, %v2114
        %v2116 = vpop.f32.mrb[0].mxu0
        %2117 = vmatprep.mubr.f32.mxu0 0.0
        %2118 = vmatmul.mubr.f32.gmra.mrb[0].mxu0 %v1916
        %v2119 = vpop.f32.mrb[0].mxu0
        %v2120 = vadd.f32 %v1951, %v2119
        %v2121 = vpop.f32.mrb[0].mxu0
        %2122 = vmatprep.mubr.f32.mxu0 0.0
        %2123 = vmatmul.mubr.f32.gmra.mrb[0].mxu0 %v1917
        %v2124 = vpop.f32.mrb[0].mxu0
        %v2125 = vadd.f32 %v1951, %v2124
        %v2126 = vpop.f32.mrb[0].mxu0
        %2127 = vmatprep.mubr.f32.mxu0 0.0
        %2128 = vmatmul.mubr.f32.gmra.mrb[0].mxu0 %v1918
        %v2129 = vpop.f32.mrb[0].mxu0
        %v2130 = vadd.f32 %v1951, %v2129
        %v2131 = vpop.f32.mrb[0].mxu0
        %2132 = vmatprep.mubr.f32.mxu0 0.0
        %2133 = vmatmul.mubr.f32.gmra.mrb[0].mxu0 %v1919
        %v2134 = vpop.f32.mrb[0].mxu0
        %v2135 = vadd.f32 %v1951, %v2134
        %v2136 = vpop.f32.mrb[0].mxu0
        %2137 = vmatprep.mubr.f32.mxu0 0.0
        %2138 = vmatmul.mubr.f32.gmra.mrb[0].mxu0 %v1920
        %v2139 = vpop.f32.mrb[0].mxu0
        %v2140 = vadd.f32 %v1951, %v2139
        %v2141 = vpop.f32.mrb[0].mxu0
        %2142 = vmatprep.mubr.f32.mxu0 0.0
        %2143 = vmatmul.mubr.f32.gmra.mrb[0].mxu0 %v1921
        %v2144 = vpop.f32.mrb[0].mxu0
        %v2145 = vadd.f32 %v1951, %v2144
        %v2146 = vpop.f32.mrb[0].mxu0
        %2147 = vmatprep.mubr.f32.mxu0 0.0
        %2148 = vmatmul.mubr.f32.gmra.mrb[0].mxu0 %v1922
        %v2149 = vpop.f32.mrb[0].mxu0
        %v2150 = vadd.f32 %v1951, %v2149
        %v2151 = vpop.f32.mrb[0].mxu0
        %2152 = vmatprep.mubr.f32.mxu0 0.0
        %2153 = vmatmul.mubr.f32.gmra.mrb[0].mxu0 %v1923
        %v2154 = vpop.f32.mrb[0].mxu0
        %v2155 = vadd.f32 %v1951, %v2154
        %v2156 = vpop.f32.mrb[0].mxu0
        %2157 = vmatprep.mubr.f32.mxu0 0.0
        %2158 = vmatmul.mubr.f32.gmra.mrb[0].mxu0 %v1924
        %v2159 = vpop.f32.mrb[0].mxu0
        %v2160 = vadd.f32 %v1951, %v2159
        %v2161 = vpop.f32.mrb[0].mxu0
        %2162 = vmatprep.mubr.f32.mxu0 0.0
        %2163 = vmatmul.mubr.f32.gmra.mrb[0].mxu0 %v1925
        %v2164 = vpop.f32.mrb[0].mxu0
        %v2165 = vadd.f32 %v1951, %v2164
        %v2166 = vpop.f32.mrb[0].mxu0
        %2167 = vmatprep.mubr.f32.mxu0 0.0
        %2168 = vmatmul.mubr.f32.gmra.mrb[0].mxu0 %v1926
        %v2169 = vpop.f32.mrb[0].mxu0
        %v2170 = vadd.f32 %v1951, %v2169
        %v2171 = vpop.f32.mrb[0].mxu0
        %2172 = vmatprep.mubr.f32.mxu0 0.0
        %2173 = vmatmul.mubr.f32.gmra.mrb[0].mxu0 %v1927
        %v2174 = vpop.f32.mrb[0].mxu0
        %v2175 = vadd.f32 %v1951, %v2174
        %v2176 = vpop.f32.mrb[0].mxu0
        %2177 = vdwg.mxu0
        %2178 = vst [vmem:[%s203] sm:$0xff] %v2020
        %2179 = vst [vmem:[%s203 + $0x8] sm:$0xff] %v2025
        %2180 = vst [vmem:[%s203 + $0x10] sm:$0xff] %v2030
        %2181 = vst [vmem:[%s203 + $0x18] sm:$0xff] %v2035
        %2182 = vst [vmem:[%s203 + $0x20] sm:$0xff] %v2040
        %2183 = vst [vmem:[%s203 + $0x28] sm:$0xff] %v2045
        %2184 = vst [vmem:[%s203 + $0x30] sm:$0xff] %v2050
        %2185 = vst [vmem:[%s203 + $0x38] sm:$0xff] %v2055
        %2186 = vst [vmem:[%s203 + $0x40] sm:$0xff] %v2060
        %2187 = vst [vmem:[%s203 + $0x48] sm:$0xff] %v2065
        %2188 = vst [vmem:[%s203 + $0x50] sm:$0xff] %v2070
        %2189 = vst [vmem:[%s203 + $0x58] sm:$0xff] %v2075
        %2190 = vst [vmem:[%s203 + $0x60] sm:$0xff] %v2080
        %2191 = vst [vmem:[%s203 + $0x68] sm:$0xff] %v2085
        %2192 = vst [vmem:[%s203 + $0x70] sm:$0xff] %v2090
        %2193 = vst [vmem:[%s203 + $0x78] sm:$0xff] %v2095
        %2194 = vst [vmem:[%s203 + $0x80] sm:$0xff] %v2100
        %2195 = vst [vmem:[%s203 + $0x88] sm:$0xff] %v2105
        %2196 = vst [vmem:[%s203 + $0x90] sm:$0xff] %v2110
        %2197 = vst [vmem:[%s203 + $0x98] sm:$0xff] %v2115
        %2198 = vst [vmem:[%s203 + $0xa0] sm:$0xff] %v2120
        %2199 = vst [vmem:[%s203 + $0xa8] sm:$0xff] %v2125
        %2200 = vst [vmem:[%s203 + $0xb0] sm:$0xff] %v2130
        %2201 = vst [vmem:[%s203 + $0xb8] sm:$0xff] %v2135
        %2202 = vst [vmem:[%s203 + $0xc0] sm:$0xff] %v2140
        %2203 = vst [vmem:[%s203 + $0xc8] sm:$0xff] %v2145
        %2204 = vst [vmem:[%s203 + $0xd0] sm:$0xff] %v2150
        %2205 = vst [vmem:[%s203 + $0xd8] sm:$0xff] %v2155
        %2206 = vst [vmem:[%s203 + $0xe0] sm:$0xff] %v2160
        %2207 = vst [vmem:[%s203 + $0xe8] sm:$0xff] %v2165
        %2208 = vst [vmem:[%s203 + $0xf0] sm:$0xff] %v2170
        %2209 = vst [vmem:[%s203 + $0xf8] sm:$0xff] %v2175
        %s2210 = sand.u32 %s97, 1
        %s2211 = scalar_lea.sflag [#allocation4], %s2210
        %s2212 = sand.u32 %s97, 1
        %s2213 = smul.addr %s2212, 256
        %s2214 = scalar_lea.vmem [#allocation7], %s2213
        // Predicated region
        $region41: #{tpu_custom_call.1} parent=31 // pred_check
          %p2215 = pneg %p107
        $region42: #{tpu_custom_call.1} parent=31 // pred_check_branch
          %2217 = sbr.rel (%p2215) target = $region44
        $region43: #{tpu_custom_call.1} parent=31 // pred_region
          %s2218 = smul.u32 32, %s21
          %s2220 = ssub.s32 4096, 4096
          %2221 = vsyncadd %s2211, %s2220
          %s2222 = smul.addr %s2218, 128
          %s2223 = scalar_lea.hbm %s3, %s2222
          %s2224 = sshll.u32 %s2214, 4
          %s2225 = int_to_ptr.vmem [resolvable:$true] %s2224
          %2230 = dma.vmem_to_hbm [thread:$0]  %s2225, 4096, %s2223, %s2211, 128, 128, 8
        $region44: #{tpu_custom_call.1} parent=31 // pred_fallthru
          _
      $region32: #{tpu_custom_call.1} parent=5 // pred_fallthru
        _
      %p2231 = scmp.le.s32.totalorder 2, %s16
      // Predicated region
      $region45: #{tpu_custom_call.1} parent=5 // pred_check
        %p2232 = pneg %p2231
      $region46: #{tpu_custom_call.1} parent=5 // pred_check_branch
        %2234 = sbr.rel (%p2232) target = $region48
      $region47: #{tpu_custom_call.1} parent=5 // pred_region
        %s2235 = ssub.s32 %s16, 2
        // Predicated region
        $region49: #{tpu_custom_call.1} parent=47 // pred_check
          %p2236 = pneg %p113
        $region50: #{tpu_custom_call.1} parent=47 // pred_check_branch
          %2238 = sbr.rel (%p2236) target = $region52
        $region51: #{tpu_custom_call.1} parent=47 // pred_region
          %s2239 = sand.u32 %s98, 1
          %s2240 = scalar_lea.sflag [#allocation4], %s2239
          %s2241 = sand.u32 %s98, 1
          %s2242 = smul.addr %s2241, 256
          %s2243 = scalar_lea.vmem [#allocation7], %s2242
          %2244 = dma.done %s2240, 4096
        $region52: #{tpu_custom_call.1} parent=47 // pred_fallthru
          _
      $region48: #{tpu_custom_call.1} parent=5 // pred_fallthru
        _
    $region6: #{tpu_custom_call.1} parent=1 // loop_footer
      %s20 = sadd.s32 1, %s16
    $region7: #{tpu_custom_call.1} parent=1 // loop_footer_branch
      %15 = sbr.rel target = $region3
    $region8: #{tpu_custom_call.1} parent=1 // loop_exit
      _
    %2245 = vsyncpa [#allocation3], 1
    %s2246 = scalar_lea.sflag [#allocation3], 1
    %2247 = vsyncpa %s2246, 1
    %2248 = vsyncpa [#allocation6], 1
    %2249 = vsyncpa [#allocation4], 1
    %s2250 = scalar_lea.sflag [#allocation4], 1
    %2251 = vsyncpa %s2250, 1

</llo_original>
